<compile_context>
chip_gen: v7x
topology: tpu7x:2x2x1
jax: 0.10.0
libtpu: 0.0.40
codegen_flags: <defaults>
</compile_context>

<pallas_src>
import functools

import jax
import jax.numpy as jnp
from jax.experimental import pallas as pl
from jax.experimental.pallas import tpu as pltpu

H1 = 128        # fc1 hidden width (module spec); fc2 output padded up to this
H2 = 64         # fc2 hidden width (module spec)
NP1_FUSED = 256 # packed fc1 ⊕ gate output width (128 fc1 + 1 gate + zero pad)


def _device_kind():
    try:
        return jax.devices()[0].device_kind.lower()
    except Exception:
        return ""


_KIND = _device_kind()
_IS_V5E = ("v5 lite" in _KIND) or ("v5e" in _KIND) or ("v5litepod" in _KIND)
_IS_V7 = "7" in _KIND
# 256-lane fc1⊕gate pack is free only where the MXU is >=256 lanes wide.
FUSE_GATE = not _IS_V5E
MAX_TB = 512 if _IS_V5E else 1024          # v5e default scoped VMEM is 16 MiB
MIN_STEPS = 2 if _IS_V7 else 1             # keep both v7x TensorCores busy


def _pick_tb(B, max_tb, min_steps):
    """Largest legal batch tile: big blocks for DMA efficiency, >= min_steps
    grid steps (v7x megacore), sublane-aligned unless it covers the batch."""
    tb = min(max_tb, B)
    if min_steps > 1 and B >= 16:
        tb = min(tb, pl.cdiv(B, min_steps))
    if tb < B:
        tb = max(8, (tb // 8) * 8)
    return tb


def _updater_kernel(fuse_gate, *refs):
    if fuse_gate:
        (e_ref, c_ref, a_ref,
         w1e_ref, w1c_ref, w1ab_ref,
         w2_ref, w3_ref, b23_ref, out_ref) = refs
        wg_ref = None
    else:
        (e_ref, c_ref, a_ref,
         w1e_ref, w1c_ref, w1ab_ref, wg_ref,
         w2_ref, w3_ref, b23_ref, out_ref) = refs

    a = a_ref[...]                                   # [TB, 1] f32

    # fc1 (+ fused gate column on v6e/v7x).  e/c are re-indexed from the
    # resident VMEM block at each use site to keep vreg live ranges short.
    h = (jnp.dot(e_ref[...].astype(jnp.bfloat16), w1e_ref[...],
                 preferred_element_type=jnp.float32)
         + jnp.dot(c_ref[...].astype(jnp.bfloat16), w1c_ref[...],
                   preferred_element_type=jnp.float32)
         + a * w1ab_ref[0:1, :]                      # A-scaled packed column
         + w1ab_ref[1:2, :])                         # packed bias (b1 [⊕ bg])

    h1 = jnp.maximum(h[:, :H1], 0.0)                 # relu(fc1(x))   [TB, 128]
    if fuse_gate:
        gz = h[:, H1:H1 + 1]                         # gate logit     [TB, 1]
    else:
        # v5e: 128-wide MXU -> keep fc1 at 128 lanes, gate logit on VPU + XLU.
        gz = (jnp.sum(e_ref[...] * wg_ref[0:1, :], axis=-1, keepdims=True)
              + jnp.sum(c_ref[...] * wg_ref[1:2, :], axis=-1, keepdims=True)
              + a * wg_ref[2:3, 0:1]
              + wg_ref[2:3, 1:2])

    # fc2 (outputs padded 64 -> 128 with zero weights/bias; padded relu cols
    # stay exactly 0 and hit zero rows of the padded fc3 weight).
    h2 = jnp.maximum(
        jnp.dot(h1.astype(jnp.bfloat16), w2_ref[...],
                preferred_element_type=jnp.float32) + b23_ref[:, :H1],
        0.0)                                         # [TB, 128]

    # fc3
    delta = (jnp.dot(h2.astype(jnp.bfloat16), w3_ref[...],
                     preferred_element_type=jnp.float32)
             + b23_ref[:, H1:])                      # [TB, D]

    # approximate sigmoid on the EUP (exp + approx reciprocal), no VALU divide.
    g = pl.reciprocal(1.0 + jnp.exp(-gz), approx=True)   # [TB, 1]

    # keep only updates that move e_t toward c_t
    e = e_ref[...]
    delta = jnp.where((c_ref[...] - e) * delta > 0, delta, 0.0)
    out_ref[...] = (e + g * delta).astype(out_ref.dtype)


def prepare_params(params, D, fuse_gate=FUSE_GATE):
    """One-time weight prep: transpose, split e/c/A, (fuse gate), pad, bf16."""
    np1 = NP1_FUSED if fuse_gate else H1
    w1_t = params["w1"].T                            # [2D+1, 128]
    wg_t = params["wg"].T                            # [2D+1, 1]

    def pack(fc1_rows, gate_rows, n_rows):
        out = jnp.zeros((n_rows, np1), jnp.float32)
        out = out.at[:, :H1].set(fc1_rows)
        if fuse_gate:
            out = out.at[:, H1:H1 + 1].set(gate_rows)
        return out

    w1e = pack(w1_t[:D], wg_t[:D], D)                            # [D, np1]
    w1c = pack(w1_t[D:2 * D], wg_t[D:2 * D], D)                  # [D, np1]
    w1a = pack(w1_t[2 * D:2 * D + 1], wg_t[2 * D:2 * D + 1], 1)  # [1, np1]
    b1 = pack(params["b1"][None, :], params["bg"][None, :], 1)   # [1, np1]
    w1ab = jnp.concatenate([w1a, b1], axis=0)                    # [2, np1] f32

    w2p = jnp.zeros((H1, H1), jnp.float32).at[:, :H2].set(params["w2"].T)
    w3p = jnp.zeros((H1, D), jnp.float32).at[:H2, :].set(params["w3"].T)
    b23 = jnp.zeros((1, H1 + D), jnp.float32)
    b23 = b23.at[0, :H2].set(params["b2"]).at[0, H1:].set(params["b3"])

    prep = dict(
        w1e=w1e.astype(jnp.bfloat16), w1c=w1c.astype(jnp.bfloat16),
        w1ab=w1ab,
        w2=w2p.astype(jnp.bfloat16), w3=w3p.astype(jnp.bfloat16),
        b23=b23)

    if not fuse_gate:
        # row 0 = wg_e, row 1 = wg_c, row 2 lane0 = wg_A, lane1 = bg
        wg = jnp.zeros((3, D), jnp.float32)
        wg = wg.at[0, :].set(params["wg"][0, :D])
        wg = wg.at[1, :].set(params["wg"][0, D:2 * D])
        wg = wg.at[2, 0].set(params["wg"][0, 2 * D])
        wg = wg.at[2, 1].set(params["bg"][0])
        prep["wg"] = wg
    return prep


@functools.partial(jax.jit, static_argnames=("max_tb", "donate_e"))
def closer_embedding_updater(e_t, c_t, A, prep, *, max_tb=MAX_TB,
                             donate_e=False):
    """e_t, c_t: [B, D], A: [B, 1] -> e_new: [B, D] (row-wise module forward)."""
    B, D = e_t.shape
    TB = _pick_tb(B, max_tb, MIN_STEPS)
    grid = (pl.cdiv(B, TB),)        # no input padding; ragged last tile masked

    row_D = pl.BlockSpec((TB, D), lambda i: (i, 0))
    row_1 = pl.BlockSpec((TB, 1), lambda i: (i, 0))

    def resident(arr):              # weights stay in VMEM across all steps
        return pl.BlockSpec(arr.shape, lambda i: (0, 0))

    operands = [e_t, c_t, A, prep["w1e"], prep["w1c"], prep["w1ab"]]
    in_specs = [row_D, row_D, row_1,
                resident(prep["w1e"]), resident(prep["w1c"]),
                resident(prep["w1ab"])]
    if not FUSE_GATE:
        operands.append(prep["wg"])
        in_specs.append(resident(prep["wg"]))
    operands += [prep["w2"], prep["w3"], prep["b23"]]
    in_specs += [resident(prep["w2"]), resident(prep["w3"]),
                 resident(prep["b23"])]

    weight_bytes = sum(int(v.size) * v.dtype.itemsize for v in prep.values())

    # Advisory cost estimate so XLA can schedule/overlap this short call.
    np1 = prep["w1e"].shape[1]
    cost = pl.CostEstimate(
        flops=int(2 * B * (2 * D * np1 + H1 * H1 + H1 * D)),
        transcendentals=int(2 * B),
        bytes_accessed=int(4 * B * (3 * D + 2) + weight_bytes))

    # Scoped-VMEM budget: double-buffered row blocks + resident weights + margin.
    vmem_limit = int(2 * (3 * TB * D * 4 + 2 * TB * 4)
                     + 2 * weight_bytes + (4 << 20))
    vmem_limit = min(max(vmem_limit, 16 << 20), 48 << 20)

    return pl.pallas_call(
        functools.partial(_updater_kernel, FUSE_GATE),
        out_shape=jax.ShapeDtypeStruct((B, D), e_t.dtype),
        grid=grid,
        in_specs=in_specs,
        out_specs=pl.BlockSpec((TB, D), lambda i: (i, 0)),
        input_output_aliases=({0: 0} if donate_e else {}),
        compiler_params=pltpu.CompilerParams(
            dimension_semantics=("parallel",),
            vmem_limit_bytes=vmem_limit),
        cost_estimate=cost,
    )(*operands)


def init_params(key, embedding_dim):
    """Deterministic init mimicking nn.Linear (uniform +-1/sqrt(fan_in))."""
    def linear(key, fan_in, fan_out):
        kw, kb = jax.random.split(key)
        bound = 1.0 / jnp.sqrt(fan_in)
        w = jax.random.uniform(kw, (fan_out, fan_in), jnp.float32, -bound, bound)
        b = jax.random.uniform(kb, (fan_out,), jnp.float32, -bound, bound)
        return w, b

    k1, k2, k3, kg = jax.random.split(key, 4)
    in_dim = embedding_dim * 2 + 1
    w1, b1 = linear(k1, in_dim, H1)
    w2, b2 = linear(k2, H1, H2)
    w3, b3 = linear(k3, H2, embedding_dim)
    wg, bg = linear(kg, in_dim, 1)
    return dict(w1=w1, b1=b1, w2=w2, b2=b2, w3=w3, b3=b3, wg=wg, bg=bg)


def reference(e_t, c_t, A, p):
    """Pure f32 reference matching the PyTorch module."""
    x = jnp.concatenate([e_t, c_t, A], axis=-1)
    h = jax.nn.relu(x @ p["w1"].T + p["b1"])
    h = jax.nn.relu(h @ p["w2"].T + p["b2"])
    delta = h @ p["w3"].T + p["b3"]
    g = jax.nn.sigmoid(x @ p["wg"].T + p["bg"])
    delta = jnp.where((c_t - e_t) * delta > 0, delta, jnp.zeros_like(delta))
    return e_t + g * delta


if __name__ == "__main__":
    embedding_dim = 256   # lane-aligned stand-in for the module's 768
    batch = 96            # several row-updates per call

    key = jax.random.PRNGKey(0)
    kp, ke, kc, ka = jax.random.split(key, 4)
    params = init_params(kp, embedding_dim)
    prep = prepare_params(params, embedding_dim, FUSE_GATE)  # one-time prep

    e_t = jax.random.normal(ke, (batch, embedding_dim), jnp.float32)
    c_t = jax.random.normal(kc, (batch, embedding_dim), jnp.float32)
    A = jax.random.uniform(ka, (batch, 1), jnp.float32)

    ref = reference(e_t, c_t, A, params)
    # bf16 weights/activations on the MXU + approx sigmoid -> loosened tolerance.
    tol = dict(atol=5e-2, rtol=5e-2)

    # 1) default path (adaptive batch tile, no input padding)
    out = jax.block_until_ready(closer_embedding_updater(e_t, c_t, A, prep))
    assert out.shape == (batch, embedding_dim)
    assert jnp.allclose(out, ref, **tol), "batched mismatch"

    # 2) ragged batch (B not a multiple of the tile) -> masked last block
    Br = 50
    out_r = jax.block_until_ready(
        closer_embedding_updater(e_t[:Br], c_t[:Br], A[:Br], prep, max_tb=32))
    assert out_r.shape == (Br, embedding_dim)
    assert jnp.allclose(out_r, ref[:Br], **tol), "ragged-tile mismatch"

    # 3) aliased e_t (in-place-style update via input_output_aliases)
    out_d = jax.block_until_ready(
        closer_embedding_updater(e_t, c_t, A, prep, donate_e=True))
    assert jnp.allclose(out_d, ref, **tol), "aliased-output mismatch"

    # 4) original module contract ([1, D] inputs) still works.
    out_1 = jax.block_until_ready(
        closer_embedding_updater(e_t[:1], c_t[:1], A[:1], prep))
    assert jnp.allclose(out_1, ref[:1], **tol), "single-row mismatch"

    print("KERNEL_OK")
</pallas_src>

<mosaic_0001>
module attributes {stable_mosaic.version = 11 : i64} {
  func.func @_updater_kernel(%arg0: i32, %arg1: memref<96x256xf32, #tpu.memory_space<vmem>>, %arg2: memref<96x256xf32, #tpu.memory_space<vmem>>, %arg3: memref<96x1xf32, #tpu.memory_space<vmem>>, %arg4: memref<256x256xbf16, #tpu.memory_space<vmem>>, %arg5: memref<256x256xbf16, #tpu.memory_space<vmem>>, %arg6: memref<2x256xf32, #tpu.memory_space<vmem>>, %arg7: memref<128x128xbf16, #tpu.memory_space<vmem>>, %arg8: memref<128x256xbf16, #tpu.memory_space<vmem>>, %arg9: memref<1x384xf32, #tpu.memory_space<vmem>>, %arg10: memref<96x256xf32, #tpu.memory_space<vmem>>) attributes {dimension_semantics = [#tpu.dimension_semantics<parallel>], iteration_bounds = array<i64: 1>, scalar_prefetch = 0 : i64, scratch_operands = 0 : i64, tpu.core_type = #tpu.core_type<tc>, window_params = [{transform_indices = @transform_0, window_bounds = array<i64: 96, 256>}, {transform_indices = @transform_1, window_bounds = array<i64: 96, 256>}, {transform_indices = @transform_2, window_bounds = array<i64: 96, 1>}, {pipeline_mode = #tpu.pipeline_mode<synchronous>, transform_indices = @transform_3, window_bounds = array<i64: 256, 256>}, {pipeline_mode = #tpu.pipeline_mode<synchronous>, transform_indices = @transform_4, window_bounds = array<i64: 256, 256>}, {pipeline_mode = #tpu.pipeline_mode<synchronous>, transform_indices = @transform_5, window_bounds = array<i64: 2, 256>}, {pipeline_mode = #tpu.pipeline_mode<synchronous>, transform_indices = @transform_6, window_bounds = array<i64: 128, 128>}, {pipeline_mode = #tpu.pipeline_mode<synchronous>, transform_indices = @transform_7, window_bounds = array<i64: 128, 256>}, {pipeline_mode = #tpu.pipeline_mode<synchronous>, transform_indices = @transform_8, window_bounds = array<i64: 1, 384>}, {transform_indices = @transform_9, window_bounds = array<i64: 96, 256>}]} {
    %c0 = arith.constant 0 : index
    %c0_0 = arith.constant 0 : index
    %0 = vector.load %arg3[%c0, %c0_0] : memref<96x1xf32, #tpu.memory_space<vmem>>, vector<96x1xf32>
    %c0_1 = arith.constant 0 : index
    %c0_2 = arith.constant 0 : index
    %1 = vector.load %arg1[%c0_1, %c0_2] : memref<96x256xf32, #tpu.memory_space<vmem>>, vector<96x256xf32>
    %2 = arith.truncf %1 : vector<96x256xf32> to vector<96x256xbf16>
    %c0_3 = arith.constant 0 : index
    %c0_4 = arith.constant 0 : index
    %3 = vector.load %arg4[%c0_3, %c0_4] : memref<256x256xbf16, #tpu.memory_space<vmem>>, vector<256x256xbf16>
    %cst = arith.constant dense<0.000000e+00> : vector<96x256xf32>
    %4 = tpu.matmul %2, %3, %cst {dimension_numbers = #tpu.dot_dimension_numbers<[1], [0], [0], [1], [0, 0, 1, 1], [], []>} : vector<96x256xbf16>, vector<256x256xbf16>, vector<96x256xf32> -> vector<96x256xf32>
    %c0_5 = arith.constant 0 : index
    %c0_6 = arith.constant 0 : index
    %5 = vector.load %arg2[%c0_5, %c0_6] : memref<96x256xf32, #tpu.memory_space<vmem>>, vector<96x256xf32>
    %6 = arith.truncf %5 : vector<96x256xf32> to vector<96x256xbf16>
    %c0_7 = arith.constant 0 : index
    %c0_8 = arith.constant 0 : index
    %7 = vector.load %arg5[%c0_7, %c0_8] : memref<256x256xbf16, #tpu.memory_space<vmem>>, vector<256x256xbf16>
    %cst_9 = arith.constant dense<0.000000e+00> : vector<96x256xf32>
    %8 = tpu.matmul %6, %7, %cst_9 {dimension_numbers = #tpu.dot_dimension_numbers<[1], [0], [0], [1], [0, 0, 1, 1], [], []>} : vector<96x256xbf16>, vector<256x256xbf16>, vector<96x256xf32> -> vector<96x256xf32>
    %9 = arith.addf %4, %8 : vector<96x256xf32>
    %c0_10 = arith.constant 0 : index
    %c0_11 = arith.constant 0 : index
    %10 = vector.load %arg6[%c0_10, %c0_11] : memref<2x256xf32, #tpu.memory_space<vmem>>, vector<1x256xf32>
    %11 = vector.broadcast %0 : vector<96x1xf32> to vector<96x256xf32>
    %12 = vector.broadcast %10 : vector<1x256xf32> to vector<96x256xf32>
    %13 = arith.mulf %11, %12 : vector<96x256xf32>
    %14 = arith.addf %9, %13 : vector<96x256xf32>
    %c1 = arith.constant 1 : index
    %c0_12 = arith.constant 0 : index
    %15 = vector.load %arg6[%c1, %c0_12] : memref<2x256xf32, #tpu.memory_space<vmem>>, vector<1x256xf32>
    %16 = vector.broadcast %15 : vector<1x256xf32> to vector<96x256xf32>
    %17 = arith.addf %14, %16 : vector<96x256xf32>
    %18 = vector.extract_strided_slice %17 {offsets = [0, 0], sizes = [96, 128], strides = [1, 1]} : vector<96x256xf32> to vector<96x128xf32>
    %cst_13 = arith.constant 0.000000e+00 : f32
    %19 = vector.broadcast %cst_13 : f32 to vector<96x128xf32>
    %20 = arith.maximumf %18, %19 : vector<96x128xf32>
    %21 = vector.extract_strided_slice %17 {offsets = [0, 128], sizes = [96, 1], strides = [1, 1]} : vector<96x256xf32> to vector<96x1xf32>
    %22 = arith.truncf %20 : vector<96x128xf32> to vector<96x128xbf16>
    %c0_14 = arith.constant 0 : index
    %c0_15 = arith.constant 0 : index
    %23 = vector.load %arg7[%c0_14, %c0_15] : memref<128x128xbf16, #tpu.memory_space<vmem>>, vector<128x128xbf16>
    %cst_16 = arith.constant dense<0.000000e+00> : vector<96x128xf32>
    %24 = tpu.matmul %22, %23, %cst_16 {dimension_numbers = #tpu.dot_dimension_numbers<[1], [0], [0], [1], [0, 0, 1, 1], [], []>} : vector<96x128xbf16>, vector<128x128xbf16>, vector<96x128xf32> -> vector<96x128xf32>
    %c0_17 = arith.constant 0 : index
    %c0_18 = arith.constant 0 : index
    %25 = vector.load %arg9[%c0_17, %c0_18] : memref<1x384xf32, #tpu.memory_space<vmem>>, vector<1x128xf32>
    %26 = vector.broadcast %25 : vector<1x128xf32> to vector<96x128xf32>
    %27 = arith.addf %24, %26 : vector<96x128xf32>
    %cst_19 = arith.constant 0.000000e+00 : f32
    %28 = vector.broadcast %cst_19 : f32 to vector<96x128xf32>
    %29 = arith.maximumf %27, %28 : vector<96x128xf32>
    %30 = arith.truncf %29 : vector<96x128xf32> to vector<96x128xbf16>
    %c0_20 = arith.constant 0 : index
    %c0_21 = arith.constant 0 : index
    %31 = vector.load %arg8[%c0_20, %c0_21] : memref<128x256xbf16, #tpu.memory_space<vmem>>, vector<128x256xbf16>
    %cst_22 = arith.constant dense<0.000000e+00> : vector<96x256xf32>
    %32 = tpu.matmul %30, %31, %cst_22 {dimension_numbers = #tpu.dot_dimension_numbers<[1], [0], [0], [1], [0, 0, 1, 1], [], []>} : vector<96x128xbf16>, vector<128x256xbf16>, vector<96x256xf32> -> vector<96x256xf32>
    %c0_23 = arith.constant 0 : index
    %c128 = arith.constant 128 : index
    %33 = vector.load %arg9[%c0_23, %c128] : memref<1x384xf32, #tpu.memory_space<vmem>>, vector<1x256xf32>
    %34 = vector.broadcast %33 : vector<1x256xf32> to vector<96x256xf32>
    %35 = arith.addf %32, %34 : vector<96x256xf32>
    %cst_24 = arith.constant 0.000000e+00 : f32
    %36 = vector.broadcast %cst_24 : f32 to vector<96x1xf32>
    %37 = arith.subf %36, %21 : vector<96x1xf32>
    %38 = math.exp %37 : vector<96x1xf32>
    %cst_25 = arith.constant 1.000000e+00 : f32
    %39 = vector.broadcast %cst_25 : f32 to vector<96x1xf32>
    %40 = arith.addf %39, %38 : vector<96x1xf32>
    %41 = tpu.reciprocal %40 {approx = true} : vector<96x1xf32> -> vector<96x1xf32>
    %c0_26 = arith.constant 0 : index
    %c0_27 = arith.constant 0 : index
    %42 = vector.load %arg1[%c0_26, %c0_27] : memref<96x256xf32, #tpu.memory_space<vmem>>, vector<96x256xf32>
    %c0_28 = arith.constant 0 : index
    %c0_29 = arith.constant 0 : index
    %43 = vector.load %arg2[%c0_28, %c0_29] : memref<96x256xf32, #tpu.memory_space<vmem>>, vector<96x256xf32>
    %44 = arith.subf %43, %42 : vector<96x256xf32>
    %45 = arith.mulf %44, %35 : vector<96x256xf32>
    %cst_30 = arith.constant 0.000000e+00 : f32
    %46 = vector.broadcast %cst_30 : f32 to vector<96x256xf32>
    %47 = arith.cmpf ogt, %45, %46 : vector<96x256xf32>
    %cst_31 = arith.constant 0.000000e+00 : f32
    %48 = vector.broadcast %cst_31 : f32 to vector<96x256xf32>
    %49 = arith.select %47, %35, %48 : vector<96x256xi1>, vector<96x256xf32>
    %50 = vector.broadcast %41 : vector<96x1xf32> to vector<96x256xf32>
    %51 = arith.mulf %50, %49 : vector<96x256xf32>
    %52 = arith.addf %42, %51 : vector<96x256xf32>
    %c0_32 = arith.constant 0 : index
    %c0_33 = arith.constant 0 : index
    %53 = vector.load %arg10[%c0_32, %c0_33] : memref<96x256xf32, #tpu.memory_space<vmem>>, vector<96x256xf32>
    tpu.vector_store %arg10[%c0_32, %c0_33], %52 {strides = array<i32>} : memref<96x256xf32, #tpu.memory_space<vmem>>, vector<96x256xf32>,
    return
  }
  func.func @transform_0(%arg0: i32) -> (i32, i32) {
    %c0_i32 = arith.constant 0 : i32
    %c0_i32_0 = arith.constant 0 : i32
    return %arg0, %c0_i32 : i32, i32
  }
  func.func @transform_1(%arg0: i32) -> (i32, i32) {
    %c0_i32 = arith.constant 0 : i32
    %c0_i32_0 = arith.constant 0 : i32
    return %arg0, %c0_i32 : i32, i32
  }
  func.func @transform_2(%arg0: i32) -> (i32, i32) {
    %c0_i32 = arith.constant 0 : i32
    %c0_i32_0 = arith.constant 0 : i32
    return %arg0, %c0_i32 : i32, i32
  }
  func.func @transform_3(%arg0: i32) -> (i32, i32) {
    %c0_i32 = arith.constant 0 : i32
    %c0_i32_0 = arith.constant 0 : i32
    %c0_i32_1 = arith.constant 0 : i32
    return %c0_i32, %c0_i32_0 : i32, i32
  }
  func.func @transform_4(%arg0: i32) -> (i32, i32) {
    %c0_i32 = arith.constant 0 : i32
    %c0_i32_0 = arith.constant 0 : i32
    %c0_i32_1 = arith.constant 0 : i32
    return %c0_i32, %c0_i32_0 : i32, i32
  }
  func.func @transform_5(%arg0: i32) -> (i32, i32) {
    %c0_i32 = arith.constant 0 : i32
    %c0_i32_0 = arith.constant 0 : i32
    %c0_i32_1 = arith.constant 0 : i32
    return %c0_i32, %c0_i32_0 : i32, i32
  }
  func.func @transform_6(%arg0: i32) -> (i32, i32) {
    %c0_i32 = arith.constant 0 : i32
    %c0_i32_0 = arith.constant 0 : i32
    %c0_i32_1 = arith.constant 0 : i32
    return %c0_i32, %c0_i32_0 : i32, i32
  }
  func.func @transform_7(%arg0: i32) -> (i32, i32) {
    %c0_i32 = arith.constant 0 : i32
    %c0_i32_0 = arith.constant 0 : i32
    %c0_i32_1 = arith.constant 0 : i32
    return %c0_i32, %c0_i32_0 : i32, i32
  }
  func.func @transform_8(%arg0: i32) -> (i32, i32) {
    %c0_i32 = arith.constant 0 : i32
    %c0_i32_0 = arith.constant 0 : i32
    %c0_i32_1 = arith.constant 0 : i32
    return %c0_i32, %c0_i32_0 : i32, i32
  }
  func.func @transform_9(%arg0: i32) -> (i32, i32) {
    %c0_i32 = arith.constant 0 : i32
    %c0_i32_0 = arith.constant 0 : i32
    return %arg0, %c0_i32 : i32, i32
  }
}

</mosaic_0001>

<llo_original>
// kernel: closer_embedding_updater.1
$region0: #{closer_embedding_updater.1}
  #allocation0 [shape = 'u32[]', space=smem, size = 0x4, offset = 0x4, fixed_abs, tag = 'smem constant byte address 0x4 - core index']
  #allocation1 [shape = 'u32[144,128]{1,0:T(1,128)}', space=vmem, size = 0x12000, scoped, tag = 'internal scratch']
  %s0 = inlined_call_operand.hbm [shape: f32[96,256], index: 0, kind: input, shape index: {}]
  %s1 = inlined_call_operand.hbm [shape: f32[96,256], index: 1, kind: input, shape index: {}]
  %s2 = inlined_call_operand.vmem [shape: f32[96,1], index: 2, kind: input, shape index: {}]
  %s3 = inlined_call_operand.hbm [shape: bf16[256,256], index: 3, kind: input, shape index: {}]
  %s4 = inlined_call_operand.hbm [shape: bf16[256,256], index: 4, kind: input, shape index: {}]
  %s5 = inlined_call_operand.vmem [shape: f32[2,256], index: 5, kind: input, shape index: {}]
  %s6 = inlined_call_operand.vmem [shape: bf16[128,128], index: 6, kind: input, shape index: {}]
  %s7 = inlined_call_operand.hbm [shape: bf16[128,256], index: 7, kind: input, shape index: {}]
  %s8 = inlined_call_operand.vmem [shape: f32[1,384], index: 8, kind: input, shape index: {}]
  %s9 = inlined_call_operand.hbm [shape: f32[96,256], index: 9, kind: output, shape index: {}]
  %s10 = sld [smem:[#allocation0]]
  $region66: #{closer_embedding_updater.1} parent=0
    _
  %s12 = ssub.s32 1, %s10
  %s13 = scalar_select 0, %s12, %s10
  $region1: #{closer_embedding_updater.1} parent=0
    #allocation2 [shape = 'u8[98304]{0}', space=vmem, size = 0x18000, scoped, tag = 'input window, operand 0, single buffered']
    #allocation3 [shape = 's32[1]{0}', space=sflag, size = 0x4, scoped, tag = 'scoped memory for closer_embedding_updater.1']
    #allocation4 [shape = 's32[1]{0}', space=sflag, size = 0x4, scoped, tag = 'scoped memory for closer_embedding_updater.1']
    #allocation5 [shape = 'u8[98304]{0}', space=vmem, size = 0x18000, scoped, tag = 'input window, operand 1, single buffered']
    #allocation6 [shape = 's32[1]{0}', space=sflag, size = 0x4, scoped, tag = 'scoped memory for closer_embedding_updater.1']
    #allocation7 [shape = 'u8[131072]{0}', space=vmem, size = 0x20000, scoped, tag = 'input window, operand 3, single buffered']
    #allocation8 [shape = 'u8[131072]{0}', space=vmem, size = 0x20000, scoped, tag = 'input window, operand 4, single buffered']
    #allocation9 [shape = 's32[1]{0}', space=sflag, size = 0x4, scoped, tag = 'scoped memory for closer_embedding_updater.1']
    #allocation10 [shape = 'u8[65536]{0}', space=vmem, size = 0x10000, scoped, tag = 'input window, operand 7, single buffered']
    #allocation11 [shape = 'u8[98304]{0}', space=vmem, size = 0x18000, scoped, tag = 'output window, operand 0, single buffered']
    %14 = vsyncpa [#allocation3], 0
    %15 = vsyncpa [#allocation6], 0
    %16 = vsyncpa [#allocation9], 0
    %17 = vsyncpa [#allocation4], 0
    // Predicated region
    $region2: #{closer_embedding_updater.1} parent=1 // pred_check
      _
    $region3: #{closer_embedding_updater.1} parent=1 // pred_check_branch
      %19 = sbr.rel (0) target = $region5
    $region4: #{closer_embedding_updater.1} parent=1 // pred_region
      %s21 = ssub.s32 3072, 3072
      %22 = vsyncadd [#allocation3], %s21
      %s23 = sshll.u32 [#allocation2], 4
      %s24 = int_to_ptr.vmem [resolvable:$true] %s23
      %29 = dma.hbm_to_vmem [thread:$0]  %s0, 3072, %s24, [#allocation3], 256, 256, 16
    $region5: #{closer_embedding_updater.1} parent=1 // pred_fallthru
      _
    // Predicated region
    $region6: #{closer_embedding_updater.1} parent=1 // pred_check
      _
    $region7: #{closer_embedding_updater.1} parent=1 // pred_check_branch
      %31 = sbr.rel (0) target = $region9
    $region8: #{closer_embedding_updater.1} parent=1 // pred_region
      %s33 = ssub.s32 3072, 3072
      %34 = vsyncadd [#allocation6], %s33
      %s35 = sshll.u32 [#allocation5], 4
      %s36 = int_to_ptr.vmem [resolvable:$true] %s35
      %41 = dma.hbm_to_vmem [thread:$0]  %s1, 3072, %s36, [#allocation6], 256, 256, 16
    $region9: #{closer_embedding_updater.1} parent=1 // pred_fallthru
      _
    // Predicated region
    $region10: #{closer_embedding_updater.1} parent=1 // pred_check
      _
    $region11: #{closer_embedding_updater.1} parent=1 // pred_check_branch
      %43 = sbr.rel (0) target = $region13
    $region12: #{closer_embedding_updater.1} parent=1 // pred_region
      _
    $region13: #{closer_embedding_updater.1} parent=1 // pred_fallthru
      _
    // Predicated region
    $region14: #{closer_embedding_updater.1} parent=1 // pred_check
      _
    $region15: #{closer_embedding_updater.1} parent=1 // pred_check_branch
      %45 = sbr.rel (0) target = $region17
    $region16: #{closer_embedding_updater.1} parent=1 // pred_region
      %s47 = ssub.s32 4096, 4096
      %48 = vsyncadd [#allocation6], %s47
      %s49 = sshll.u32 [#allocation7], 4
      %s50 = int_to_ptr.vmem [resolvable:$true] %s49
      %55 = dma.hbm_to_vmem [thread:$0]  %s3, 4096, %s50, [#allocation6], 128, 128, 8
    $region17: #{closer_embedding_updater.1} parent=1 // pred_fallthru
      _
    // Predicated region
    $region18: #{closer_embedding_updater.1} parent=1 // pred_check
      _
    $region19: #{closer_embedding_updater.1} parent=1 // pred_check_branch
      %57 = sbr.rel (0) target = $region21
    $region20: #{closer_embedding_updater.1} parent=1 // pred_region
      %s59 = ssub.s32 4096, 4096
      %60 = vsyncadd [#allocation9], %s59
      %s61 = sshll.u32 [#allocation8], 4
      %s62 = int_to_ptr.vmem [resolvable:$true] %s61
      %67 = dma.hbm_to_vmem [thread:$0]  %s4, 4096, %s62, [#allocation9], 128, 128, 8
    $region21: #{closer_embedding_updater.1} parent=1 // pred_fallthru
      _
    // Predicated region
    $region22: #{closer_embedding_updater.1} parent=1 // pred_check
      _
    $region23: #{closer_embedding_updater.1} parent=1 // pred_check_branch
      %69 = sbr.rel (0) target = $region25
    $region24: #{closer_embedding_updater.1} parent=1 // pred_region
      _
    $region25: #{closer_embedding_updater.1} parent=1 // pred_fallthru
      _
    // Predicated region
    $region26: #{closer_embedding_updater.1} parent=1 // pred_check
      _
    $region27: #{closer_embedding_updater.1} parent=1 // pred_check_branch
      %71 = sbr.rel (0) target = $region29
    $region28: #{closer_embedding_updater.1} parent=1 // pred_region
      _
    $region29: #{closer_embedding_updater.1} parent=1 // pred_fallthru
      _
    // Predicated region
    $region30: #{closer_embedding_updater.1} parent=1 // pred_check
      _
    $region31: #{closer_embedding_updater.1} parent=1 // pred_check_branch
      %73 = sbr.rel (0) target = $region33
    $region32: #{closer_embedding_updater.1} parent=1 // pred_region
      %s75 = ssub.s32 2048, 2048
      %76 = vsyncadd [#allocation9], %s75
      %s77 = sshll.u32 [#allocation10], 4
      %s78 = int_to_ptr.vmem [resolvable:$true] %s77
      %83 = dma.hbm_to_vmem [thread:$0]  %s7, 2048, %s78, [#allocation9], 128, 128, 8
    $region33: #{closer_embedding_updater.1} parent=1 // pred_fallthru
      _
    // Predicated region
    $region34: #{closer_embedding_updater.1} parent=1 // pred_check
      _
    $region35: #{closer_embedding_updater.1} parent=1 // pred_check_branch
      %85 = sbr.rel (0) target = $region37
    $region36: #{closer_embedding_updater.1} parent=1 // pred_region
      _
    $region37: #{closer_embedding_updater.1} parent=1 // pred_fallthru
      _
    // Predicated region
    $region38: #{closer_embedding_updater.1} parent=1 // pred_check
      _
    $region39: #{closer_embedding_updater.1} parent=1 // pred_check_branch
      %87 = sbr.rel (0) target = $region41
    $region40: #{closer_embedding_updater.1} parent=1 // pred_region
      %88 = dma.done [#allocation3], 3072
    $region41: #{closer_embedding_updater.1} parent=1 // pred_fallthru
      _
    // Predicated region
    $region42: #{closer_embedding_updater.1} parent=1 // pred_check
      _
    $region43: #{closer_embedding_updater.1} parent=1 // pred_check_branch
      %90 = sbr.rel (0) target = $region45
    $region44: #{closer_embedding_updater.1} parent=1 // pred_region
      %91 = dma.done [#allocation6], 3072
    $region45: #{closer_embedding_updater.1} parent=1 // pred_fallthru
      _
    // Predicated region
    $region46: #{closer_embedding_updater.1} parent=1 // pred_check
      _
    $region47: #{closer_embedding_updater.1} parent=1 // pred_check_branch
      %93 = sbr.rel (0) target = $region49
    $region48: #{closer_embedding_updater.1} parent=1 // pred_region
      %94 = dma.done [#allocation6], 4096
    $region49: #{closer_embedding_updater.1} parent=1 // pred_fallthru
      _
    // Predicated region
    $region50: #{closer_embedding_updater.1} parent=1 // pred_check
      _
    $region51: #{closer_embedding_updater.1} parent=1 // pred_check_branch
      %96 = sbr.rel (0) target = $region53
    $region52: #{closer_embedding_updater.1} parent=1 // pred_region
      %97 = dma.done [#allocation9], 4096
    $region53: #{closer_embedding_updater.1} parent=1 // pred_fallthru
      _
    // Predicated region
    $region54: #{closer_embedding_updater.1} parent=1 // pred_check
      _
    $region55: #{closer_embedding_updater.1} parent=1 // pred_check_branch
      %99 = sbr.rel (0) target = $region57
    $region56: #{closer_embedding_updater.1} parent=1 // pred_region
      %100 = dma.done [#allocation9], 2048
    $region57: #{closer_embedding_updater.1} parent=1 // pred_fallthru
      _
    %v102 = vld [vmem:[%s2] sm:$0xff]
    %v103 = vld [vmem:[%s2 + $0x8] sm:$0xff]
    %v104 = vld [vmem:[%s2 + $0x10] sm:$0xff]
    %v105 = vld [vmem:[%s2 + $0x18] sm:$0xff]
    %v106 = vld [vmem:[%s2 + $0x20] sm:$0xff]
    %v107 = vld [vmem:[%s2 + $0x28] sm:$0xff]
    %v108 = vld [vmem:[%s2 + $0x30] sm:$0xff]
    %v109 = vld [vmem:[%s2 + $0x38] sm:$0xff]
    %v110 = vld [vmem:[%s2 + $0x40] sm:$0xff]
    %v111 = vld [vmem:[%s2 + $0x48] sm:$0xff]
    %v112 = vld [vmem:[%s2 + $0x50] sm:$0xff]
    %v113 = vld [vmem:[%s2 + $0x58] sm:$0xff]
    %v114 = vld [vmem:[#allocation2] sm:$0xff]
    %v115 = vld [vmem:[#allocation2 + $0x8] sm:$0xff]
    %v116 = vld [vmem:[#allocation2 + $0x10] sm:$0xff]
    %v117 = vld [vmem:[#allocation2 + $0x18] sm:$0xff]
    %v118 = vld [vmem:[#allocation2 + $0x20] sm:$0xff]
    %v119 = vld [vmem:[#allocation2 + $0x28] sm:$0xff]
    %v120 = vld [vmem:[#allocation2 + $0x30] sm:$0xff]
    %v121 = vld [vmem:[#allocation2 + $0x38] sm:$0xff]
    %v122 = vld [vmem:[#allocation2 + $0x40] sm:$0xff]
    %v123 = vld [vmem:[#allocation2 + $0x48] sm:$0xff]
    %v124 = vld [vmem:[#allocation2 + $0x50] sm:$0xff]
    %v125 = vld [vmem:[#allocation2 + $0x58] sm:$0xff]
    %v126 = vld [vmem:[#allocation2 + $0x60] sm:$0xff]
    %v127 = vld [vmem:[#allocation2 + $0x68] sm:$0xff]
    %v128 = vld [vmem:[#allocation2 + $0x70] sm:$0xff]
    %v129 = vld [vmem:[#allocation2 + $0x78] sm:$0xff]
    %v130 = vld [vmem:[#allocation2 + $0x80] sm:$0xff]
    %v131 = vld [vmem:[#allocation2 + $0x88] sm:$0xff]
    %v132 = vld [vmem:[#allocation2 + $0x90] sm:$0xff]
    %v133 = vld [vmem:[#allocation2 + $0x98] sm:$0xff]
    %v134 = vld [vmem:[#allocation2 + $0xa0] sm:$0xff]
    %v135 = vld [vmem:[#allocation2 + $0xa8] sm:$0xff]
    %v136 = vld [vmem:[#allocation2 + $0xb0] sm:$0xff]
    %v137 = vld [vmem:[#allocation2 + $0xb8] sm:$0xff]
    %v138 = vpack.c.bf16 %v116, %v114
    %v139 = vpack.c.bf16 %v117, %v115
    %v140 = vpack.c.bf16 %v120, %v118
    %v141 = vpack.c.bf16 %v121, %v119
    %v142 = vpack.c.bf16 %v124, %v122
    %v143 = vpack.c.bf16 %v125, %v123
    %v144 = vpack.c.bf16 %v128, %v126
    %v145 = vpack.c.bf16 %v129, %v127
    %v146 = vpack.c.bf16 %v132, %v130
    %v147 = vpack.c.bf16 %v133, %v131
    %v148 = vpack.c.bf16 %v136, %v134
    %v149 = vpack.c.bf16 %v137, %v135
    %v150 = vld [vmem:[#allocation7] sm:$0xff]
    %v151 = vld [vmem:[#allocation7 + $0x8] sm:$0xff]
    %v152 = vld [vmem:[#allocation7 + $0x10] sm:$0xff]
    %v153 = vld [vmem:[#allocation7 + $0x18] sm:$0xff]
    %v154 = vld [vmem:[#allocation7 + $0x20] sm:$0xff]
    %v155 = vld [vmem:[#allocation7 + $0x28] sm:$0xff]
    %v156 = vld [vmem:[#allocation7 + $0x30] sm:$0xff]
    %v157 = vld [vmem:[#allocation7 + $0x38] sm:$0xff]
    %v158 = vld [vmem:[#allocation7 + $0x40] sm:$0xff]
    %v159 = vld [vmem:[#allocation7 + $0x48] sm:$0xff]
    %v160 = vld [vmem:[#allocation7 + $0x50] sm:$0xff]
    %v161 = vld [vmem:[#allocation7 + $0x58] sm:$0xff]
    %v162 = vld [vmem:[#allocation7 + $0x60] sm:$0xff]
    %v163 = vld [vmem:[#allocation7 + $0x68] sm:$0xff]
    %v164 = vld [vmem:[#allocation7 + $0x70] sm:$0xff]
    %v165 = vld [vmem:[#allocation7 + $0x78] sm:$0xff]
    %v166 = vld [vmem:[#allocation7 + $0x80] sm:$0xff]
    %v167 = vld [vmem:[#allocation7 + $0x88] sm:$0xff]
    %v168 = vld [vmem:[#allocation7 + $0x90] sm:$0xff]
    %v169 = vld [vmem:[#allocation7 + $0x98] sm:$0xff]
    %v170 = vld [vmem:[#allocation7 + $0xa0] sm:$0xff]
    %v171 = vld [vmem:[#allocation7 + $0xa8] sm:$0xff]
    %v172 = vld [vmem:[#allocation7 + $0xb0] sm:$0xff]
    %v173 = vld [vmem:[#allocation7 + $0xb8] sm:$0xff]
    %v174 = vld [vmem:[#allocation7 + $0xc0] sm:$0xff]
    %v175 = vld [vmem:[#allocation7 + $0xc8] sm:$0xff]
    %v176 = vld [vmem:[#allocation7 + $0xd0] sm:$0xff]
    %v177 = vld [vmem:[#allocation7 + $0xd8] sm:$0xff]
    %v178 = vld [vmem:[#allocation7 + $0xe0] sm:$0xff]
    %v179 = vld [vmem:[#allocation7 + $0xe8] sm:$0xff]
    %v180 = vld [vmem:[#allocation7 + $0xf0] sm:$0xff]
    %v181 = vld [vmem:[#allocation7 + $0xf8] sm:$0xff]
    %v182 = vld [vmem:[#allocation5] sm:$0xff]
    %v183 = vld [vmem:[#allocation5 + $0x8] sm:$0xff]
    %v184 = vld [vmem:[#allocation5 + $0x10] sm:$0xff]
    %v185 = vld [vmem:[#allocation5 + $0x18] sm:$0xff]
    %v186 = vld [vmem:[#allocation5 + $0x20] sm:$0xff]
    %v187 = vld [vmem:[#allocation5 + $0x28] sm:$0xff]
    %v188 = vld [vmem:[#allocation5 + $0x30] sm:$0xff]
    %v189 = vld [vmem:[#allocation5 + $0x38] sm:$0xff]
    %v190 = vld [vmem:[#allocation5 + $0x40] sm:$0xff]
    %v191 = vld [vmem:[#allocation5 + $0x48] sm:$0xff]
    %v192 = vld [vmem:[#allocation5 + $0x50] sm:$0xff]
    %v193 = vld [vmem:[#allocation5 + $0x58] sm:$0xff]
    %v194 = vld [vmem:[#allocation5 + $0x60] sm:$0xff]
    %v195 = vld [vmem:[#allocation5 + $0x68] sm:$0xff]
    %v196 = vld [vmem:[#allocation5 + $0x70] sm:$0xff]
    %v197 = vld [vmem:[#allocation5 + $0x78] sm:$0xff]
    %v198 = vld [vmem:[#allocation5 + $0x80] sm:$0xff]
    %v199 = vld [vmem:[#allocation5 + $0x88] sm:$0xff]
    %v200 = vld [vmem:[#allocation5 + $0x90] sm:$0xff]
    %v201 = vld [vmem:[#allocation5 + $0x98] sm:$0xff]
    %v202 = vld [vmem:[#allocation5 + $0xa0] sm:$0xff]
    %v203 = vld [vmem:[#allocation5 + $0xa8] sm:$0xff]
    %v204 = vld [vmem:[#allocation5 + $0xb0] sm:$0xff]
    %v205 = vld [vmem:[#allocation5 + $0xb8] sm:$0xff]
    %v206 = vpack.c.bf16 %v184, %v182
    %v207 = vpack.c.bf16 %v185, %v183
    %v208 = vpack.c.bf16 %v188, %v186
    %v209 = vpack.c.bf16 %v189, %v187
    %v210 = vpack.c.bf16 %v192, %v190
    %v211 = vpack.c.bf16 %v193, %v191
    %v212 = vpack.c.bf16 %v196, %v194
    %v213 = vpack.c.bf16 %v197, %v195
    %v214 = vpack.c.bf16 %v200, %v198
    %v215 = vpack.c.bf16 %v201, %v199
    %v216 = vpack.c.bf16 %v204, %v202
    %v217 = vpack.c.bf16 %v205, %v203
    %v218 = vld [vmem:[#allocation8] sm:$0xff]
    %v219 = vld [vmem:[#allocation8 + $0x8] sm:$0xff]
    %v220 = vld [vmem:[#allocation8 + $0x10] sm:$0xff]
    %v221 = vld [vmem:[#allocation8 + $0x18] sm:$0xff]
    %v222 = vld [vmem:[#allocation8 + $0x20] sm:$0xff]
    %v223 = vld [vmem:[#allocation8 + $0x28] sm:$0xff]
    %v224 = vld [vmem:[#allocation8 + $0x30] sm:$0xff]
    %v225 = vld [vmem:[#allocation8 + $0x38] sm:$0xff]
    %v226 = vld [vmem:[#allocation8 + $0x40] sm:$0xff]
    %v227 = vld [vmem:[#allocation8 + $0x48] sm:$0xff]
    %v228 = vld [vmem:[#allocation8 + $0x50] sm:$0xff]
    %v229 = vld [vmem:[#allocation8 + $0x58] sm:$0xff]
    %v230 = vld [vmem:[#allocation8 + $0x60] sm:$0xff]
    %v231 = vld [vmem:[#allocation8 + $0x68] sm:$0xff]
    %v232 = vld [vmem:[#allocation8 + $0x70] sm:$0xff]
    %v233 = vld [vmem:[#allocation8 + $0x78] sm:$0xff]
    %v234 = vld [vmem:[#allocation8 + $0x80] sm:$0xff]
    %v235 = vld [vmem:[#allocation8 + $0x88] sm:$0xff]
    %v236 = vld [vmem:[#allocation8 + $0x90] sm:$0xff]
    %v237 = vld [vmem:[#allocation8 + $0x98] sm:$0xff]
    %v238 = vld [vmem:[#allocation8 + $0xa0] sm:$0xff]
    %v239 = vld [vmem:[#allocation8 + $0xa8] sm:$0xff]
    %v240 = vld [vmem:[#allocation8 + $0xb0] sm:$0xff]
    %v241 = vld [vmem:[#allocation8 + $0xb8] sm:$0xff]
    %v242 = vld [vmem:[#allocation8 + $0xc0] sm:$0xff]
    %v243 = vld [vmem:[#allocation8 + $0xc8] sm:$0xff]
    %v244 = vld [vmem:[#allocation8 + $0xd0] sm:$0xff]
    %v245 = vld [vmem:[#allocation8 + $0xd8] sm:$0xff]
    %v246 = vld [vmem:[#allocation8 + $0xe0] sm:$0xff]
    %v247 = vld [vmem:[#allocation8 + $0xe8] sm:$0xff]
    %v248 = vld [vmem:[#allocation8 + $0xf0] sm:$0xff]
    %v249 = vld [vmem:[#allocation8 + $0xf8] sm:$0xff]
    %v282 = vunpack.c.l.b16 %v218
    %v283 = vunpack.c.h.b16 %v218
    %v284 = vunpack.c.l.b16 %v219
    %v285 = vunpack.c.h.b16 %v219
    %v286 = vunpack.c.l.b16 %v220
    %v287 = vunpack.c.h.b16 %v220
    %v288 = vunpack.c.l.b16 %v221
    %v289 = vunpack.c.h.b16 %v221
    %v290 = vunpack.c.l.b16 %v222
    %v291 = vunpack.c.h.b16 %v222
    %v292 = vunpack.c.l.b16 %v223
    %v293 = vunpack.c.h.b16 %v223
    %v294 = vunpack.c.l.b16 %v224
    %v295 = vunpack.c.h.b16 %v224
    %v296 = vunpack.c.l.b16 %v225
    %v297 = vunpack.c.h.b16 %v225
    %v298 = vunpack.c.l.b16 %v226
    %v299 = vunpack.c.h.b16 %v226
    %v300 = vunpack.c.l.b16 %v227
    %v301 = vunpack.c.h.b16 %v227
    %v302 = vunpack.c.l.b16 %v228
    %v303 = vunpack.c.h.b16 %v228
    %v304 = vunpack.c.l.b16 %v229
    %v305 = vunpack.c.h.b16 %v229
    %v306 = vunpack.c.l.b16 %v230
    %v307 = vunpack.c.h.b16 %v230
    %v308 = vunpack.c.l.b16 %v231
    %v309 = vunpack.c.h.b16 %v231
    %v310 = vunpack.c.l.b16 %v232
    %v311 = vunpack.c.h.b16 %v232
    %v312 = vunpack.c.l.b16 %v233
    %v313 = vunpack.c.h.b16 %v233
    %v314 = vunpack.c.l.b16 %v234
    %v315 = vunpack.c.h.b16 %v234
    %v316 = vunpack.c.l.b16 %v235
    %v317 = vunpack.c.h.b16 %v235
    %v318 = vunpack.c.l.b16 %v236
    %v319 = vunpack.c.h.b16 %v236
    %v320 = vunpack.c.l.b16 %v237
    %v321 = vunpack.c.h.b16 %v237
    %v322 = vunpack.c.l.b16 %v238
    %v323 = vunpack.c.h.b16 %v238
    %v324 = vunpack.c.l.b16 %v239
    %v325 = vunpack.c.h.b16 %v239
    %v326 = vunpack.c.l.b16 %v240
    %v327 = vunpack.c.h.b16 %v240
    %v328 = vunpack.c.l.b16 %v241
    %v329 = vunpack.c.h.b16 %v241
    %v330 = vunpack.c.l.b16 %v242
    %v331 = vunpack.c.h.b16 %v242
    %v332 = vunpack.c.l.b16 %v243
    %v333 = vunpack.c.h.b16 %v243
    %v334 = vunpack.c.l.b16 %v244
    %v335 = vunpack.c.h.b16 %v244
    %v336 = vunpack.c.l.b16 %v245
    %v337 = vunpack.c.h.b16 %v245
    %v338 = vunpack.c.l.b16 %v246
    %v339 = vunpack.c.h.b16 %v246
    %v340 = vunpack.c.l.b16 %v247
    %v341 = vunpack.c.h.b16 %v247
    %v342 = vunpack.c.l.b16 %v248
    %v343 = vunpack.c.h.b16 %v248
    %v344 = vunpack.c.l.b16 %v249
    %v345 = vunpack.c.h.b16 %v249
    %v346 = vpack.c.b16 %v284, %v282
    %v347 = vpack.c.b16 %v285, %v283
    %v348 = vpack.c.b16 %v288, %v286
    %v349 = vpack.c.b16 %v289, %v287
    %v350 = vpack.c.b16 %v292, %v290
    %v351 = vpack.c.b16 %v293, %v291
    %v352 = vpack.c.b16 %v296, %v294
    %v353 = vpack.c.b16 %v297, %v295
    %v354 = vpack.c.b16 %v300, %v298
    %v355 = vpack.c.b16 %v301, %v299
    %v356 = vpack.c.b16 %v304, %v302
    %v357 = vpack.c.b16 %v305, %v303
    %v358 = vpack.c.b16 %v308, %v306
    %v359 = vpack.c.b16 %v309, %v307
    %v360 = vpack.c.b16 %v312, %v310
    %v361 = vpack.c.b16 %v313, %v311
    %v362 = vpack.c.b16 %v316, %v314
    %v363 = vpack.c.b16 %v317, %v315
    %v364 = vpack.c.b16 %v320, %v318
    %v365 = vpack.c.b16 %v321, %v319
    %v366 = vpack.c.b16 %v324, %v322
    %v367 = vpack.c.b16 %v325, %v323
    %v368 = vpack.c.b16 %v328, %v326
    %v369 = vpack.c.b16 %v329, %v327
    %v370 = vpack.c.b16 %v332, %v330
    %v371 = vpack.c.b16 %v333, %v331
    %v372 = vpack.c.b16 %v336, %v334
    %v373 = vpack.c.b16 %v337, %v335
    %v374 = vpack.c.b16 %v340, %v338
    %v375 = vpack.c.b16 %v341, %v339
    %v376 = vpack.c.b16 %v344, %v342
    %v377 = vpack.c.b16 %v345, %v343
    %410 = vmatprep.subr.bf16.mxu0 %v347
    %411 = vmatpush1.bf16.msra.mxu0 %v346
    %412 = vmatprep.subr.bf16.mxu0 %v349
    %413 = vmatpush1.bf16.msra.mxu0 %v348
    %414 = vmatprep.subr.bf16.mxu0 %v351
    %415 = vmatpush1.bf16.msra.mxu0 %v350
    %416 = vmatprep.subr.bf16.mxu0 %v353
    %417 = vmatpush1.bf16.msra.mxu0 %v352
    %418 = vmatprep.subr.bf16.mxu0 %v355
    %419 = vmatpush1.bf16.msra.mxu0 %v354
    %420 = vmatprep.subr.bf16.mxu0 %v357
    %421 = vmatpush1.bf16.msra.mxu0 %v356
    %422 = vmatprep.subr.bf16.mxu0 %v359
    %423 = vmatpush1.bf16.msra.mxu0 %v358
    %424 = vmatprep.subr.bf16.mxu0 %v361
    %425 = vmatpush1.bf16.msra.mxu0 %v360
    %426 = vmatprep.subr.bf16.mxu0 %v363
    %427 = vmatpush1.bf16.msra.mxu0 %v362
    %428 = vmatprep.subr.bf16.mxu0 %v365
    %429 = vmatpush1.bf16.msra.mxu0 %v364
    %430 = vmatprep.subr.bf16.mxu0 %v367
    %431 = vmatpush1.bf16.msra.mxu0 %v366
    %432 = vmatprep.subr.bf16.mxu0 %v369
    %433 = vmatpush1.bf16.msra.mxu0 %v368
    %434 = vmatprep.subr.bf16.mxu0 %v371
    %435 = vmatpush1.bf16.msra.mxu0 %v370
    %436 = vmatprep.subr.bf16.mxu0 %v373
    %437 = vmatpush1.bf16.msra.mxu0 %v372
    %438 = vmatprep.subr.bf16.mxu0 %v375
    %439 = vmatpush1.bf16.msra.mxu0 %v374
    %440 = vmatprep.subr.bf16.mxu0 %v377
    %441 = vmatpush1.bf16.msra.mxu0 %v376
    %442 = vmatprep.mubr.bf16.mxu0 %v207
    %443 = vmatmul.mubr.bf16.gmra.mrb[0].mxu0 %v206
    %v444 = vpop.f32.mrb[0].mxu0
    %v445 = vadd.f32 0.0, %v444
    %v446 = vpop.f32.mrb[0].mxu0
    %v447 = vadd.f32 0.0, %v446
    %v448 = vpop.f32.mrb[0].mxu0
    %v449 = vadd.f32 0.0, %v448
    %v450 = vpop.f32.mrb[0].mxu0
    %v451 = vadd.f32 0.0, %v450
    %452 = vmatprep.mubr.bf16.mxu0 %v209
    %453 = vmatmul.mubr.bf16.gmra.mrb[0].mxu0 %v208
    %v454 = vpop.f32.mrb[0].mxu0
    %v455 = vadd.f32 0.0, %v454
    %v456 = vpop.f32.mrb[0].mxu0
    %v457 = vadd.f32 0.0, %v456
    %v458 = vpop.f32.mrb[0].mxu0
    %v459 = vadd.f32 0.0, %v458
    %v460 = vpop.f32.mrb[0].mxu0
    %v461 = vadd.f32 0.0, %v460
    %462 = vmatprep.mubr.bf16.mxu0 %v211
    %463 = vmatmul.mubr.bf16.gmra.mrb[0].mxu0 %v210
    %v464 = vpop.f32.mrb[0].mxu0
    %v465 = vadd.f32 0.0, %v464
    %v466 = vpop.f32.mrb[0].mxu0
    %v467 = vadd.f32 0.0, %v466
    %v468 = vpop.f32.mrb[0].mxu0
    %v469 = vadd.f32 0.0, %v468
    %v470 = vpop.f32.mrb[0].mxu0
    %v471 = vadd.f32 0.0, %v470
    %472 = vmatprep.mubr.bf16.mxu0 %v213
    %473 = vmatmul.mubr.bf16.gmra.mrb[0].mxu0 %v212
    %v474 = vpop.f32.mrb[0].mxu0
    %v475 = vadd.f32 0.0, %v474
    %v476 = vpop.f32.mrb[0].mxu0
    %v477 = vadd.f32 0.0, %v476
    %v478 = vpop.f32.mrb[0].mxu0
    %v479 = vadd.f32 0.0, %v478
    %v480 = vpop.f32.mrb[0].mxu0
    %v481 = vadd.f32 0.0, %v480
    %482 = vmatprep.mubr.bf16.mxu0 %v215
    %483 = vmatmul.mubr.bf16.gmra.mrb[0].mxu0 %v214
    %v484 = vpop.f32.mrb[0].mxu0
    %v485 = vadd.f32 0.0, %v484
    %v486 = vpop.f32.mrb[0].mxu0
    %v487 = vadd.f32 0.0, %v486
    %v488 = vpop.f32.mrb[0].mxu0
    %v489 = vadd.f32 0.0, %v488
    %v490 = vpop.f32.mrb[0].mxu0
    %v491 = vadd.f32 0.0, %v490
    %492 = vmatprep.mubr.bf16.mxu0 %v217
    %493 = vmatmul.mubr.bf16.gmra.mrb[0].mxu0 %v216
    %v494 = vpop.f32.mrb[0].mxu0
    %v495 = vadd.f32 0.0, %v494
    %v496 = vpop.f32.mrb[0].mxu0
    %v497 = vadd.f32 0.0, %v496
    %v498 = vpop.f32.mrb[0].mxu0
    %v499 = vadd.f32 0.0, %v498
    %v500 = vpop.f32.mrb[0].mxu0
    %v501 = vadd.f32 0.0, %v500
    %502 = vdwg.mxu0
    %v535 = vunpack.c.l.b16 %v150
    %v536 = vunpack.c.h.b16 %v150
    %v537 = vunpack.c.l.b16 %v151
    %v538 = vunpack.c.h.b16 %v151
    %v539 = vunpack.c.l.b16 %v152
    %v540 = vunpack.c.h.b16 %v152
    %v541 = vunpack.c.l.b16 %v153
    %v542 = vunpack.c.h.b16 %v153
    %v543 = vunpack.c.l.b16 %v154
    %v544 = vunpack.c.h.b16 %v154
    %v545 = vunpack.c.l.b16 %v155
    %v546 = vunpack.c.h.b16 %v155
    %v547 = vunpack.c.l.b16 %v156
    %v548 = vunpack.c.h.b16 %v156
    %v549 = vunpack.c.l.b16 %v157
    %v550 = vunpack.c.h.b16 %v157
    %v551 = vunpack.c.l.b16 %v158
    %v552 = vunpack.c.h.b16 %v158
    %v553 = vunpack.c.l.b16 %v159
    %v554 = vunpack.c.h.b16 %v159
    %v555 = vunpack.c.l.b16 %v160
    %v556 = vunpack.c.h.b16 %v160
    %v557 = vunpack.c.l.b16 %v161
    %v558 = vunpack.c.h.b16 %v161
    %v559 = vunpack.c.l.b16 %v162
    %v560 = vunpack.c.h.b16 %v162
    %v561 = vunpack.c.l.b16 %v163
    %v562 = vunpack.c.h.b16 %v163
    %v563 = vunpack.c.l.b16 %v164
    %v564 = vunpack.c.h.b16 %v164
    %v565 = vunpack.c.l.b16 %v165
    %v566 = vunpack.c.h.b16 %v165
    %v567 = vunpack.c.l.b16 %v166
    %v568 = vunpack.c.h.b16 %v166
    %v569 = vunpack.c.l.b16 %v167
    %v570 = vunpack.c.h.b16 %v167
    %v571 = vunpack.c.l.b16 %v168
    %v572 = vunpack.c.h.b16 %v168
    %v573 = vunpack.c.l.b16 %v169
    %v574 = vunpack.c.h.b16 %v169
    %v575 = vunpack.c.l.b16 %v170
    %v576 = vunpack.c.h.b16 %v170
    %v577 = vunpack.c.l.b16 %v171
    %v578 = vunpack.c.h.b16 %v171
    %v579 = vunpack.c.l.b16 %v172
    %v580 = vunpack.c.h.b16 %v172
    %v581 = vunpack.c.l.b16 %v173
    %v582 = vunpack.c.h.b16 %v173
    %v583 = vunpack.c.l.b16 %v174
    %v584 = vunpack.c.h.b16 %v174
    %v585 = vunpack.c.l.b16 %v175
    %v586 = vunpack.c.h.b16 %v175
    %v587 = vunpack.c.l.b16 %v176
    %v588 = vunpack.c.h.b16 %v176
    %v589 = vunpack.c.l.b16 %v177
    %v590 = vunpack.c.h.b16 %v177
    %v591 = vunpack.c.l.b16 %v178
    %v592 = vunpack.c.h.b16 %v178
    %v593 = vunpack.c.l.b16 %v179
    %v594 = vunpack.c.h.b16 %v179
    %v595 = vunpack.c.l.b16 %v180
    %v596 = vunpack.c.h.b16 %v180
    %v597 = vunpack.c.l.b16 %v181
    %v598 = vunpack.c.h.b16 %v181
    %v599 = vpack.c.b16 %v537, %v535
    %v600 = vpack.c.b16 %v538, %v536
    %v601 = vpack.c.b16 %v541, %v539
    %v602 = vpack.c.b16 %v542, %v540
    %v603 = vpack.c.b16 %v545, %v543
    %v604 = vpack.c.b16 %v546, %v544
    %v605 = vpack.c.b16 %v549, %v547
    %v606 = vpack.c.b16 %v550, %v548
    %v607 = vpack.c.b16 %v553, %v551
    %v608 = vpack.c.b16 %v554, %v552
    %v609 = vpack.c.b16 %v557, %v555
    %v610 = vpack.c.b16 %v558, %v556
    %v611 = vpack.c.b16 %v561, %v559
    %v612 = vpack.c.b16 %v562, %v560
    %v613 = vpack.c.b16 %v565, %v563
    %v614 = vpack.c.b16 %v566, %v564
    %v615 = vpack.c.b16 %v569, %v567
    %v616 = vpack.c.b16 %v570, %v568
    %v617 = vpack.c.b16 %v573, %v571
    %v618 = vpack.c.b16 %v574, %v572
    %v619 = vpack.c.b16 %v577, %v575
    %v620 = vpack.c.b16 %v578, %v576
    %v621 = vpack.c.b16 %v581, %v579
    %v622 = vpack.c.b16 %v582, %v580
    %v623 = vpack.c.b16 %v585, %v583
    %v624 = vpack.c.b16 %v586, %v584
    %v625 = vpack.c.b16 %v589, %v587
    %v626 = vpack.c.b16 %v590, %v588
    %v627 = vpack.c.b16 %v593, %v591
    %v628 = vpack.c.b16 %v594, %v592
    %v629 = vpack.c.b16 %v597, %v595
    %v630 = vpack.c.b16 %v598, %v596
    %663 = vmatprep.subr.bf16.mxu0 %v600
    %664 = vmatpush1.bf16.msra.mxu0 %v599
    %665 = vmatprep.subr.bf16.mxu0 %v602
    %666 = vmatpush1.bf16.msra.mxu0 %v601
    %667 = vmatprep.subr.bf16.mxu0 %v604
    %668 = vmatpush1.bf16.msra.mxu0 %v603
    %669 = vmatprep.subr.bf16.mxu0 %v606
    %670 = vmatpush1.bf16.msra.mxu0 %v605
    %671 = vmatprep.subr.bf16.mxu0 %v608
    %672 = vmatpush1.bf16.msra.mxu0 %v607
    %673 = vmatprep.subr.bf16.mxu0 %v610
    %674 = vmatpush1.bf16.msra.mxu0 %v609
    %675 = vmatprep.subr.bf16.mxu0 %v612
    %676 = vmatpush1.bf16.msra.mxu0 %v611
    %677 = vmatprep.subr.bf16.mxu0 %v614
    %678 = vmatpush1.bf16.msra.mxu0 %v613
    %679 = vmatprep.subr.bf16.mxu0 %v616
    %680 = vmatpush1.bf16.msra.mxu0 %v615
    %681 = vmatprep.subr.bf16.mxu0 %v618
    %682 = vmatpush1.bf16.msra.mxu0 %v617
    %683 = vmatprep.subr.bf16.mxu0 %v620
    %684 = vmatpush1.bf16.msra.mxu0 %v619
    %685 = vmatprep.subr.bf16.mxu0 %v622
    %686 = vmatpush1.bf16.msra.mxu0 %v621
    %687 = vmatprep.subr.bf16.mxu0 %v624
    %688 = vmatpush1.bf16.msra.mxu0 %v623
    %689 = vmatprep.subr.bf16.mxu0 %v626
    %690 = vmatpush1.bf16.msra.mxu0 %v625
    %691 = vmatprep.subr.bf16.mxu0 %v628
    %692 = vmatpush1.bf16.msra.mxu0 %v627
    %693 = vmatprep.subr.bf16.mxu0 %v630
    %694 = vmatpush1.bf16.msra.mxu0 %v629
    %695 = vmatprep.mubr.bf16.mxu0 %v139
    %696 = vmatmul.mubr.bf16.gmra.mrb[0].mxu0 %v138
    %v697 = vpop.f32.mrb[0].mxu0
    %v698 = vadd.f32 %v445, %v697
    %v699 = vpop.f32.mrb[0].mxu0
    %v700 = vadd.f32 %v447, %v699
    %v701 = vpop.f32.mrb[0].mxu0
    %v702 = vadd.f32 %v449, %v701
    %v703 = vpop.f32.mrb[0].mxu0
    %v704 = vadd.f32 %v451, %v703
    %705 = vmatprep.mubr.bf16.mxu0 %v141
    %706 = vmatmul.mubr.bf16.gmra.mrb[0].mxu0 %v140
    %v707 = vpop.f32.mrb[0].mxu0
    %v708 = vadd.f32 %v455, %v707
    %v709 = vpop.f32.mrb[0].mxu0
    %v710 = vadd.f32 %v457, %v709
    %v711 = vpop.f32.mrb[0].mxu0
    %v712 = vadd.f32 %v459, %v711
    %v713 = vpop.f32.mrb[0].mxu0
    %v714 = vadd.f32 %v461, %v713
    %715 = vmatprep.mubr.bf16.mxu0 %v143
    %716 = vmatmul.mubr.bf16.gmra.mrb[0].mxu0 %v142
    %v717 = vpop.f32.mrb[0].mxu0
    %v718 = vadd.f32 %v465, %v717
    %v719 = vpop.f32.mrb[0].mxu0
    %v720 = vadd.f32 %v467, %v719
    %v721 = vpop.f32.mrb[0].mxu0
    %v722 = vadd.f32 %v469, %v721
    %v723 = vpop.f32.mrb[0].mxu0
    %v724 = vadd.f32 %v471, %v723
    %725 = vmatprep.mubr.bf16.mxu0 %v145
    %726 = vmatmul.mubr.bf16.gmra.mrb[0].mxu0 %v144
    %v727 = vpop.f32.mrb[0].mxu0
    %v728 = vadd.f32 %v475, %v727
    %v729 = vpop.f32.mrb[0].mxu0
    %v730 = vadd.f32 %v477, %v729
    %v731 = vpop.f32.mrb[0].mxu0
    %v732 = vadd.f32 %v479, %v731
    %v733 = vpop.f32.mrb[0].mxu0
    %v734 = vadd.f32 %v481, %v733
    %735 = vmatprep.mubr.bf16.mxu0 %v147
    %736 = vmatmul.mubr.bf16.gmra.mrb[0].mxu0 %v146
    %v737 = vpop.f32.mrb[0].mxu0
    %v738 = vadd.f32 %v485, %v737
    %v739 = vpop.f32.mrb[0].mxu0
    %v740 = vadd.f32 %v487, %v739
    %v741 = vpop.f32.mrb[0].mxu0
    %v742 = vadd.f32 %v489, %v741
    %v743 = vpop.f32.mrb[0].mxu0
    %v744 = vadd.f32 %v491, %v743
    %745 = vmatprep.mubr.bf16.mxu0 %v149
    %746 = vmatmul.mubr.bf16.gmra.mrb[0].mxu0 %v148
    %v747 = vpop.f32.mrb[0].mxu0
    %v748 = vadd.f32 %v495, %v747
    %v749 = vpop.f32.mrb[0].mxu0
    %v750 = vadd.f32 %v497, %v749
    %v751 = vpop.f32.mrb[0].mxu0
    %v752 = vadd.f32 %v499, %v751
    %v753 = vpop.f32.mrb[0].mxu0
    %v754 = vadd.f32 %v501, %v753
    %755 = vdwg.mxu0
    %v756 = vld [vmem:[%s5] ss:$2 sm:$0x3]
    %758 = vset.pattern.permute.xlu0 0
    %759 = vperm.xlu0 %758, %v102
    %v760 = vpop.permute.xlu0 %759
    %763 = vset.pattern.permute.xlu0 0
    %764 = vperm.xlu0 %763, %v103
    %v765 = vpop.permute.xlu0 %764
    %768 = vset.pattern.permute.xlu0 0
    %769 = vperm.xlu0 %768, %v104
    %v770 = vpop.permute.xlu0 %769
    %773 = vset.pattern.permute.xlu0 0
    %774 = vperm.xlu0 %773, %v105
    %v775 = vpop.permute.xlu0 %774
    %778 = vset.pattern.permute.xlu0 0
    %779 = vperm.xlu0 %778, %v106
    %v780 = vpop.permute.xlu0 %779
    %783 = vset.pattern.permute.xlu0 0
    %784 = vperm.xlu0 %783, %v107
    %v785 = vpop.permute.xlu0 %784
    %788 = vset.pattern.permute.xlu0 0
    %789 = vperm.xlu0 %788, %v108
    %v790 = vpop.permute.xlu0 %789
    %793 = vset.pattern.permute.xlu0 0
    %794 = vperm.xlu0 %793, %v109
    %v795 = vpop.permute.xlu0 %794
    %798 = vset.pattern.permute.xlu0 0
    %799 = vperm.xlu0 %798, %v110
    %v800 = vpop.permute.xlu0 %799
    %803 = vset.pattern.permute.xlu0 0
    %804 = vperm.xlu0 %803, %v111
    %v805 = vpop.permute.xlu0 %804
    %808 = vset.pattern.permute.xlu0 0
    %809 = vperm.xlu0 %808, %v112
    %v810 = vpop.permute.xlu0 %809
    %813 = vset.pattern.permute.xlu0 0
    %814 = vperm.xlu0 %813, %v113
    %v815 = vpop.permute.xlu0 %814
    %v818 = vlaneseq
    %v819 = vshrl.u32 %v818, 7
    %v820 = vsub.s32 0, %v819
    %v821 = vrot.slane %v756, %v820
    %v822 = vlaneseq
    %v823 = vshrl.u32 %v822, 7
    %v824 = vsub.s32 1, %v823
    %v825 = vrot.slane %v756, %v824
    %v828 = vmul.f32 %v760, %v821
    %v829 = vmul.f32 %v760, %v825
    %v830 = vmul.f32 %v765, %v821
    %v831 = vmul.f32 %v765, %v825
    %v832 = vmul.f32 %v770, %v821
    %v833 = vmul.f32 %v770, %v825
    %v834 = vmul.f32 %v775, %v821
    %v835 = vmul.f32 %v775, %v825
    %v836 = vmul.f32 %v780, %v821
    %v837 = vmul.f32 %v780, %v825
    %v838 = vmul.f32 %v785, %v821
    %v839 = vmul.f32 %v785, %v825
    %v840 = vmul.f32 %v790, %v821
    %v841 = vmul.f32 %v790, %v825
    %v842 = vmul.f32 %v795, %v821
    %v843 = vmul.f32 %v795, %v825
    %v844 = vmul.f32 %v800, %v821
    %v845 = vmul.f32 %v800, %v825
    %v846 = vmul.f32 %v805, %v821
    %v847 = vmul.f32 %v805, %v825
    %v848 = vmul.f32 %v810, %v821
    %v849 = vmul.f32 %v810, %v825
    %v850 = vmul.f32 %v815, %v821
    %v851 = vmul.f32 %v815, %v825
    %v852 = vadd.f32 %v698, %v828
    %v853 = vadd.f32 %v700, %v829
    %v854 = vadd.f32 %v702, %v830
    %v855 = vadd.f32 %v704, %v831
    %v856 = vadd.f32 %v708, %v832
    %v857 = vadd.f32 %v710, %v833
    %v858 = vadd.f32 %v712, %v834
    %v859 = vadd.f32 %v714, %v835
    %v860 = vadd.f32 %v718, %v836
    %v861 = vadd.f32 %v720, %v837
    %v862 = vadd.f32 %v722, %v838
    %v863 = vadd.f32 %v724, %v839
    %v864 = vadd.f32 %v728, %v840
    %v865 = vadd.f32 %v730, %v841
    %v866 = vadd.f32 %v732, %v842
    %v867 = vadd.f32 %v734, %v843
    %v868 = vadd.f32 %v738, %v844
    %v869 = vadd.f32 %v740, %v845
    %v870 = vadd.f32 %v742, %v846
    %v871 = vadd.f32 %v744, %v847
    %v872 = vadd.f32 %v748, %v848
    %v873 = vadd.f32 %v750, %v849
    %v874 = vadd.f32 %v752, %v850
    %v875 = vadd.f32 %v754, %v851
    %s876 = scalar_lea.vmem %s5, 1
    %v877 = vld [vmem:[%s876] ss:$2 sm:$0x3]
    %v879 = vlaneseq
    %v880 = vshrl.u32 %v879, 7
    %v881 = vsub.s32 0, %v880
    %v882 = vrot.slane %v877, %v881
    %v883 = vlaneseq
    %v884 = vshrl.u32 %v883, 7
    %v885 = vsub.s32 1, %v884
    %v886 = vrot.slane %v877, %v885
    %v889 = vadd.f32 %v852, %v882
    %v890 = vadd.f32 %v853, %v886
    %v891 = vadd.f32 %v854, %v882
    %v892 = vadd.f32 %v855, %v886
    %v893 = vadd.f32 %v856, %v882
    %v894 = vadd.f32 %v857, %v886
    %v895 = vadd.f32 %v858, %v882
    %v896 = vadd.f32 %v859, %v886
    %v897 = vadd.f32 %v860, %v882
    %v898 = vadd.f32 %v861, %v886
    %v899 = vadd.f32 %v862, %v882
    %v900 = vadd.f32 %v863, %v886
    %v901 = vadd.f32 %v864, %v882
    %v902 = vadd.f32 %v865, %v886
    %v903 = vadd.f32 %v866, %v882
    %v904 = vadd.f32 %v867, %v886
    %v905 = vadd.f32 %v868, %v882
    %v906 = vadd.f32 %v869, %v886
    %v907 = vadd.f32 %v870, %v882
    %v908 = vadd.f32 %v871, %v886
    %v909 = vadd.f32 %v872, %v882
    %v910 = vadd.f32 %v873, %v886
    %v911 = vadd.f32 %v874, %v882
    %v912 = vadd.f32 %v875, %v886
    %v913 = vmax.f32 %v889, 0.0
    %v914 = vmax.f32 %v891, 0.0
    %v915 = vmax.f32 %v893, 0.0
    %v916 = vmax.f32 %v895, 0.0
    %v917 = vmax.f32 %v897, 0.0
    %v918 = vmax.f32 %v899, 0.0
    %v919 = vmax.f32 %v901, 0.0
    %v920 = vmax.f32 %v903, 0.0
    %v921 = vmax.f32 %v905, 0.0
    %v922 = vmax.f32 %v907, 0.0
    %v923 = vmax.f32 %v909, 0.0
    %v924 = vmax.f32 %v911, 0.0
    %v925 = vpack.c.bf16 %v914, %v913
    %v926 = vpack.c.bf16 %v916, %v915
    %v927 = vpack.c.bf16 %v918, %v917
    %v928 = vpack.c.bf16 %v920, %v919
    %v929 = vpack.c.bf16 %v922, %v921
    %v930 = vpack.c.bf16 %v924, %v923
    %v931 = vld [vmem:[%s6] sm:$0xf]
    %v932 = vld [vmem:[%s6 + $0x4] sm:$0xf]
    %v933 = vld [vmem:[%s6 + $0x8] sm:$0xf]
    %v934 = vld [vmem:[%s6 + $0xc] sm:$0xf]
    %v935 = vld [vmem:[%s6 + $0x10] sm:$0xf]
    %v936 = vld [vmem:[%s6 + $0x14] sm:$0xf]
    %v937 = vld [vmem:[%s6 + $0x18] sm:$0xf]
    %v938 = vld [vmem:[%s6 + $0x1c] sm:$0xf]
    %v939 = vld [vmem:[%s6 + $0x20] sm:$0xf]
    %v940 = vld [vmem:[%s6 + $0x24] sm:$0xf]
    %v941 = vld [vmem:[%s6 + $0x28] sm:$0xf]
    %v942 = vld [vmem:[%s6 + $0x2c] sm:$0xf]
    %v943 = vld [vmem:[%s6 + $0x30] sm:$0xf]
    %v944 = vld [vmem:[%s6 + $0x34] sm:$0xf]
    %v945 = vld [vmem:[%s6 + $0x38] sm:$0xf]
    %v946 = vld [vmem:[%s6 + $0x3c] sm:$0xf]
    %v947 = vld [vmem:[%s8] sm:$0x1]
    %v949 = vlaneseq
    %v950 = vshrl.u32 %v949, 7
    %v951 = vsub.s32 0, %v950
    %v952 = vrot.slane %v947, %v951
    %v970 = vunpack.c.l.b16 %v931
    %v971 = vunpack.c.l.b16 %v932
    %v972 = vunpack.c.l.b16 %v933
    %v973 = vunpack.c.l.b16 %v934
    %v974 = vunpack.c.l.b16 %v935
    %v975 = vunpack.c.l.b16 %v936
    %v976 = vunpack.c.l.b16 %v937
    %v977 = vunpack.c.l.b16 %v938
    %v978 = vunpack.c.l.b16 %v939
    %v979 = vunpack.c.l.b16 %v940
    %v980 = vunpack.c.l.b16 %v941
    %v981 = vunpack.c.l.b16 %v942
    %v982 = vunpack.c.l.b16 %v943
    %v983 = vunpack.c.l.b16 %v944
    %v984 = vunpack.c.l.b16 %v945
    %v985 = vunpack.c.l.b16 %v946
    %v986 = vpack.c.b16 %v971, %v970
    %v987 = vpack.c.b16 %v973, %v972
    %v988 = vpack.c.b16 %v975, %v974
    %v989 = vpack.c.b16 %v977, %v976
    %v990 = vpack.c.b16 %v979, %v978
    %v991 = vpack.c.b16 %v981, %v980
    %v992 = vpack.c.b16 %v983, %v982
    %v993 = vpack.c.b16 %v985, %v984
    %1002 = vmatprep.subr.bf16.mxu0 0
    %1003 = vmatpush1.bf16.msra.mxu0 %v986
    %1004 = vmatprep.subr.bf16.mxu0 0
    %1005 = vmatpush1.bf16.msra.mxu0 %v987
    %1006 = vmatprep.subr.bf16.mxu0 0
    %1007 = vmatpush1.bf16.msra.mxu0 %v988
    %1008 = vmatprep.subr.bf16.mxu0 0
    %1009 = vmatpush1.bf16.msra.mxu0 %v989
    %1010 = vmatprep.subr.bf16.mxu0 0
    %1011 = vmatpush1.bf16.msra.mxu0 %v990
    %1012 = vmatprep.subr.bf16.mxu0 0
    %1013 = vmatpush1.bf16.msra.mxu0 %v991
    %1014 = vmatprep.subr.bf16.mxu0 0
    %1015 = vmatpush1.bf16.msra.mxu0 %v992
    %1016 = vmatprep.subr.bf16.mxu0 0
    %1017 = vmatpush1.bf16.msra.mxu0 %v993
    %1018 = vmatprep.subr.bf16.mxu0 0
    %1019 = vmatpush1.bf16.msra.mxu0 0
    %1020 = vmatprep.subr.bf16.mxu0 0
    %1021 = vmatpush1.bf16.msra.mxu0 0
    %1022 = vmatprep.subr.bf16.mxu0 0
    %1023 = vmatpush1.bf16.msra.mxu0 0
    %1024 = vmatprep.subr.bf16.mxu0 0
    %1025 = vmatpush1.bf16.msra.mxu0 0
    %1026 = vmatprep.subr.bf16.mxu0 0
    %1027 = vmatpush1.bf16.msra.mxu0 0
    %1028 = vmatprep.subr.bf16.mxu0 0
    %1029 = vmatpush1.bf16.msra.mxu0 0
    %1030 = vmatprep.subr.bf16.mxu0 0
    %1031 = vmatpush1.bf16.msra.mxu0 0
    %1032 = vmatprep.subr.bf16.mxu0 0
    %1033 = vmatpush1.bf16.msra.mxu0 0
    %1034 = vmatprep.mubr.bf16.mxu0 0
    %1035 = vmatmul.mubr.bf16.gmra.mrb[0].mxu0 %v925
    %v1036 = vpop.f32.mrb[0].mxu0
    %v1037 = vadd.f32 %v952, %v1036
    %v1038 = vpop.f32.mrb[0].mxu0
    %v1039 = vpop.f32.mrb[0].mxu0
    %v1040 = vadd.f32 %v952, %v1039
    %v1041 = vpop.f32.mrb[0].mxu0
    %1042 = vmatprep.mubr.bf16.mxu0 0
    %1043 = vmatmul.mubr.bf16.gmra.mrb[0].mxu0 %v926
    %v1044 = vpop.f32.mrb[0].mxu0
    %v1045 = vadd.f32 %v952, %v1044
    %v1046 = vpop.f32.mrb[0].mxu0
    %v1047 = vpop.f32.mrb[0].mxu0
    %v1048 = vadd.f32 %v952, %v1047
    %v1049 = vpop.f32.mrb[0].mxu0
    %1050 = vmatprep.mubr.bf16.mxu0 0
    %1051 = vmatmul.mubr.bf16.gmra.mrb[0].mxu0 %v927
    %v1052 = vpop.f32.mrb[0].mxu0
    %v1053 = vadd.f32 %v952, %v1052
    %v1054 = vpop.f32.mrb[0].mxu0
    %v1055 = vpop.f32.mrb[0].mxu0
    %v1056 = vadd.f32 %v952, %v1055
    %v1057 = vpop.f32.mrb[0].mxu0
    %1058 = vmatprep.mubr.bf16.mxu0 0
    %1059 = vmatmul.mubr.bf16.gmra.mrb[0].mxu0 %v928
    %v1060 = vpop.f32.mrb[0].mxu0
    %v1061 = vadd.f32 %v952, %v1060
    %v1062 = vpop.f32.mrb[0].mxu0
    %v1063 = vpop.f32.mrb[0].mxu0
    %v1064 = vadd.f32 %v952, %v1063
    %v1065 = vpop.f32.mrb[0].mxu0
    %1066 = vmatprep.mubr.bf16.mxu0 0
    %1067 = vmatmul.mubr.bf16.gmra.mrb[0].mxu0 %v929
    %v1068 = vpop.f32.mrb[0].mxu0
    %v1069 = vadd.f32 %v952, %v1068
    %v1070 = vpop.f32.mrb[0].mxu0
    %v1071 = vpop.f32.mrb[0].mxu0
    %v1072 = vadd.f32 %v952, %v1071
    %v1073 = vpop.f32.mrb[0].mxu0
    %1074 = vmatprep.mubr.bf16.mxu0 0
    %1075 = vmatmul.mubr.bf16.gmra.mrb[0].mxu0 %v930
    %v1076 = vpop.f32.mrb[0].mxu0
    %v1077 = vadd.f32 %v952, %v1076
    %v1078 = vpop.f32.mrb[0].mxu0
    %v1079 = vpop.f32.mrb[0].mxu0
    %v1080 = vadd.f32 %v952, %v1079
    %v1081 = vpop.f32.mrb[0].mxu0
    %1082 = vdwg.mxu0
    %v1083 = vmax.f32 %v1037, 0.0
    %v1084 = vmax.f32 %v1040, 0.0
    %v1085 = vmax.f32 %v1045, 0.0
    %v1086 = vmax.f32 %v1048, 0.0
    %v1087 = vmax.f32 %v1053, 0.0
    %v1088 = vmax.f32 %v1056, 0.0
    %v1089 = vmax.f32 %v1061, 0.0
    %v1090 = vmax.f32 %v1064, 0.0
    %v1091 = vmax.f32 %v1069, 0.0
    %v1092 = vmax.f32 %v1072, 0.0
    %v1093 = vmax.f32 %v1077, 0.0
    %v1094 = vmax.f32 %v1080, 0.0
    %v1095 = vpack.c.bf16 %v1084, %v1083
    %v1096 = vpack.c.bf16 %v1086, %v1085
    %v1097 = vpack.c.bf16 %v1088, %v1087
    %v1098 = vpack.c.bf16 %v1090, %v1089
    %v1099 = vpack.c.bf16 %v1092, %v1091
    %v1100 = vpack.c.bf16 %v1094, %v1093
    %v1101 = vld [vmem:[#allocation10] sm:$0xff]
    %v1102 = vld [vmem:[#allocation10 + $0x8] sm:$0xff]
    %v1103 = vld [vmem:[#allocation10 + $0x10] sm:$0xff]
    %v1104 = vld [vmem:[#allocation10 + $0x18] sm:$0xff]
    %v1105 = vld [vmem:[#allocation10 + $0x20] sm:$0xff]
    %v1106 = vld [vmem:[#allocation10 + $0x28] sm:$0xff]
    %v1107 = vld [vmem:[#allocation10 + $0x30] sm:$0xff]
    %v1108 = vld [vmem:[#allocation10 + $0x38] sm:$0xff]
    %v1109 = vld [vmem:[#allocation10 + $0x40] sm:$0xff]
    %v1110 = vld [vmem:[#allocation10 + $0x48] sm:$0xff]
    %v1111 = vld [vmem:[#allocation10 + $0x50] sm:$0xff]
    %v1112 = vld [vmem:[#allocation10 + $0x58] sm:$0xff]
    %v1113 = vld [vmem:[#allocation10 + $0x60] sm:$0xff]
    %v1114 = vld [vmem:[#allocation10 + $0x68] sm:$0xff]
    %v1115 = vld [vmem:[#allocation10 + $0x70] sm:$0xff]
    %v1116 = vld [vmem:[#allocation10 + $0x78] sm:$0xff]
    %v1117 = vld [vmem:[%s8 + $0x1] sm:$0x3]
    %v1119 = vlaneseq
    %v1120 = vshrl.u32 %v1119, 7
    %v1121 = vsub.s32 0, %v1120
    %v1122 = vrot.slane %v1117, %v1121
    %v1123 = vlaneseq
    %v1124 = vshrl.u32 %v1123, 7
    %v1125 = vsub.s32 1, %v1124
    %v1126 = vrot.slane %v1117, %v1125
    %v1145 = vunpack.c.l.b16 %v1101
    %v1146 = vunpack.c.h.b16 %v1101
    %v1147 = vunpack.c.l.b16 %v1102
    %v1148 = vunpack.c.h.b16 %v1102
    %v1149 = vunpack.c.l.b16 %v1103
    %v1150 = vunpack.c.h.b16 %v1103
    %v1151 = vunpack.c.l.b16 %v1104
    %v1152 = vunpack.c.h.b16 %v1104
    %v1153 = vunpack.c.l.b16 %v1105
    %v1154 = vunpack.c.h.b16 %v1105
    %v1155 = vunpack.c.l.b16 %v1106
    %v1156 = vunpack.c.h.b16 %v1106
    %v1157 = vunpack.c.l.b16 %v1107
    %v1158 = vunpack.c.h.b16 %v1107
    %v1159 = vunpack.c.l.b16 %v1108
    %v1160 = vunpack.c.h.b16 %v1108
    %v1161 = vunpack.c.l.b16 %v1109
    %v1162 = vunpack.c.h.b16 %v1109
    %v1163 = vunpack.c.l.b16 %v1110
    %v1164 = vunpack.c.h.b16 %v1110
    %v1165 = vunpack.c.l.b16 %v1111
    %v1166 = vunpack.c.h.b16 %v1111
    %v1167 = vunpack.c.l.b16 %v1112
    %v1168 = vunpack.c.h.b16 %v1112
    %v1169 = vunpack.c.l.b16 %v1113
    %v1170 = vunpack.c.h.b16 %v1113
    %v1171 = vunpack.c.l.b16 %v1114
    %v1172 = vunpack.c.h.b16 %v1114
    %v1173 = vunpack.c.l.b16 %v1115
    %v1174 = vunpack.c.h.b16 %v1115
    %v1175 = vunpack.c.l.b16 %v1116
    %v1176 = vunpack.c.h.b16 %v1116
    %v1177 = vpack.c.b16 %v1147, %v1145
    %v1178 = vpack.c.b16 %v1148, %v1146
    %v1179 = vpack.c.b16 %v1151, %v1149
    %v1180 = vpack.c.b16 %v1152, %v1150
    %v1181 = vpack.c.b16 %v1155, %v1153
    %v1182 = vpack.c.b16 %v1156, %v1154
    %v1183 = vpack.c.b16 %v1159, %v1157
    %v1184 = vpack.c.b16 %v1160, %v1158
    %v1185 = vpack.c.b16 %v1163, %v1161
    %v1186 = vpack.c.b16 %v1164, %v1162
    %v1187 = vpack.c.b16 %v1167, %v1165
    %v1188 = vpack.c.b16 %v1168, %v1166
    %v1189 = vpack.c.b16 %v1171, %v1169
    %v1190 = vpack.c.b16 %v1172, %v1170
    %v1191 = vpack.c.b16 %v1175, %v1173
    %v1192 = vpack.c.b16 %v1176, %v1174
    %1209 = vmatprep.subr.bf16.mxu0 %v1178
    %1210 = vmatpush1.bf16.msra.mxu0 %v1177
    %1211 = vmatprep.subr.bf16.mxu0 %v1180
    %1212 = vmatpush1.bf16.msra.mxu0 %v1179
    %1213 = vmatprep.subr.bf16.mxu0 %v1182
    %1214 = vmatpush1.bf16.msra.mxu0 %v1181
    %1215 = vmatprep.subr.bf16.mxu0 %v1184
    %1216 = vmatpush1.bf16.msra.mxu0 %v1183
    %1217 = vmatprep.subr.bf16.mxu0 %v1186
    %1218 = vmatpush1.bf16.msra.mxu0 %v1185
    %1219 = vmatprep.subr.bf16.mxu0 %v1188
    %1220 = vmatpush1.bf16.msra.mxu0 %v1187
    %1221 = vmatprep.subr.bf16.mxu0 %v1190
    %1222 = vmatpush1.bf16.msra.mxu0 %v1189
    %1223 = vmatprep.subr.bf16.mxu0 %v1192
    %1224 = vmatpush1.bf16.msra.mxu0 %v1191
    %1225 = vmatprep.subr.bf16.mxu0 0
    %1226 = vmatpush1.bf16.msra.mxu0 0
    %1227 = vmatprep.subr.bf16.mxu0 0
    %1228 = vmatpush1.bf16.msra.mxu0 0
    %1229 = vmatprep.subr.bf16.mxu0 0
    %1230 = vmatpush1.bf16.msra.mxu0 0
    %1231 = vmatprep.subr.bf16.mxu0 0
    %1232 = vmatpush1.bf16.msra.mxu0 0
    %1233 = vmatprep.subr.bf16.mxu0 0
    %1234 = vmatpush1.bf16.msra.mxu0 0
    %1235 = vmatprep.subr.bf16.mxu0 0
    %1236 = vmatpush1.bf16.msra.mxu0 0
    %1237 = vmatprep.subr.bf16.mxu0 0
    %1238 = vmatpush1.bf16.msra.mxu0 0
    %1239 = vmatprep.subr.bf16.mxu0 0
    %1240 = vmatpush1.bf16.msra.mxu0 0
    %1241 = vmatprep.mubr.bf16.mxu0 0
    %1242 = vmatmul.mubr.bf16.gmra.mrb[0].mxu0 %v1095
    %v1243 = vpop.f32.mrb[0].mxu0
    %v1244 = vadd.f32 %v1122, %v1243
    %v1245 = vpop.f32.mrb[0].mxu0
    %v1246 = vadd.f32 %v1126, %v1245
    %v1247 = vpop.f32.mrb[0].mxu0
    %v1248 = vadd.f32 %v1122, %v1247
    %v1249 = vpop.f32.mrb[0].mxu0
    %v1250 = vadd.f32 %v1126, %v1249
    %1251 = vmatprep.mubr.bf16.mxu0 0
    %1252 = vmatmul.mubr.bf16.gmra.mrb[0].mxu0 %v1096
    %v1253 = vpop.f32.mrb[0].mxu0
    %v1254 = vadd.f32 %v1122, %v1253
    %v1255 = vpop.f32.mrb[0].mxu0
    %v1256 = vadd.f32 %v1126, %v1255
    %v1257 = vpop.f32.mrb[0].mxu0
    %v1258 = vadd.f32 %v1122, %v1257
    %v1259 = vpop.f32.mrb[0].mxu0
    %v1260 = vadd.f32 %v1126, %v1259
    %1261 = vmatprep.mubr.bf16.mxu0 0
    %1262 = vmatmul.mubr.bf16.gmra.mrb[0].mxu0 %v1097
    %v1263 = vpop.f32.mrb[0].mxu0
    %v1264 = vadd.f32 %v1122, %v1263
    %v1265 = vpop.f32.mrb[0].mxu0
    %v1266 = vadd.f32 %v1126, %v1265
    %v1267 = vpop.f32.mrb[0].mxu0
    %v1268 = vadd.f32 %v1122, %v1267
    %v1269 = vpop.f32.mrb[0].mxu0
    %v1270 = vadd.f32 %v1126, %v1269
    %1271 = vmatprep.mubr.bf16.mxu0 0
    %1272 = vmatmul.mubr.bf16.gmra.mrb[0].mxu0 %v1098
    %v1273 = vpop.f32.mrb[0].mxu0
    %v1274 = vadd.f32 %v1122, %v1273
    %v1275 = vpop.f32.mrb[0].mxu0
    %v1276 = vadd.f32 %v1126, %v1275
    %v1277 = vpop.f32.mrb[0].mxu0
    %v1278 = vadd.f32 %v1122, %v1277
    %v1279 = vpop.f32.mrb[0].mxu0
    %v1280 = vadd.f32 %v1126, %v1279
    %1281 = vmatprep.mubr.bf16.mxu0 0
    %1282 = vmatmul.mubr.bf16.gmra.mrb[0].mxu0 %v1099
    %v1283 = vpop.f32.mrb[0].mxu0
    %v1284 = vadd.f32 %v1122, %v1283
    %v1285 = vpop.f32.mrb[0].mxu0
    %v1286 = vadd.f32 %v1126, %v1285
    %v1287 = vpop.f32.mrb[0].mxu0
    %v1288 = vadd.f32 %v1122, %v1287
    %v1289 = vpop.f32.mrb[0].mxu0
    %v1290 = vadd.f32 %v1126, %v1289
    %1291 = vmatprep.mubr.bf16.mxu0 0
    %1292 = vmatmul.mubr.bf16.gmra.mrb[0].mxu0 %v1100
    %v1293 = vpop.f32.mrb[0].mxu0
    %v1294 = vadd.f32 %v1122, %v1293
    %v1295 = vpop.f32.mrb[0].mxu0
    %v1296 = vadd.f32 %v1126, %v1295
    %v1297 = vpop.f32.mrb[0].mxu0
    %v1298 = vadd.f32 %v1122, %v1297
    %v1299 = vpop.f32.mrb[0].mxu0
    %v1300 = vadd.f32 %v1126, %v1299
    %1301 = vdwg.mxu0
    %v1302 = vsub.f32 0.0, %v890
    %v1303 = vsub.f32 0.0, %v892
    %v1304 = vsub.f32 0.0, %v894
    %v1305 = vsub.f32 0.0, %v896
    %v1306 = vsub.f32 0.0, %v898
    %v1307 = vsub.f32 0.0, %v900
    %v1308 = vsub.f32 0.0, %v902
    %v1309 = vsub.f32 0.0, %v904
    %v1310 = vsub.f32 0.0, %v906
    %v1311 = vsub.f32 0.0, %v908
    %v1312 = vsub.f32 0.0, %v910
    %v1313 = vsub.f32 0.0, %v912
    %v1314 = vmul.f32 %v1302, 1.442695
    %v1315 = vpow.pop %v1314
    %v1316 = vmul.f32 %v1303, 1.442695
    %v1317 = vpow.pop %v1316
    %v1318 = vmul.f32 %v1304, 1.442695
    %v1319 = vpow.pop %v1318
    %v1320 = vmul.f32 %v1305, 1.442695
    %v1321 = vpow.pop %v1320
    %v1322 = vmul.f32 %v1306, 1.442695
    %v1323 = vpow.pop %v1322
    %v1324 = vmul.f32 %v1307, 1.442695
    %v1325 = vpow.pop %v1324
    %v1326 = vmul.f32 %v1308, 1.442695
    %v1327 = vpow.pop %v1326
    %v1328 = vmul.f32 %v1309, 1.442695
    %v1329 = vpow.pop %v1328
    %v1330 = vmul.f32 %v1310, 1.442695
    %v1331 = vpow.pop %v1330
    %v1332 = vmul.f32 %v1311, 1.442695
    %v1333 = vpow.pop %v1332
    %v1334 = vmul.f32 %v1312, 1.442695
    %v1335 = vpow.pop %v1334
    %v1336 = vmul.f32 %v1313, 1.442695
    %v1337 = vpow.pop %v1336
    %v1338 = vadd.f32 %v1315, 1.0
    %v1339 = vadd.f32 %v1317, 1.0
    %v1340 = vadd.f32 %v1319, 1.0
    %v1341 = vadd.f32 %v1321, 1.0
    %v1342 = vadd.f32 %v1323, 1.0
    %v1343 = vadd.f32 %v1325, 1.0
    %v1344 = vadd.f32 %v1327, 1.0
    %v1345 = vadd.f32 %v1329, 1.0
    %v1346 = vadd.f32 %v1331, 1.0
    %v1347 = vadd.f32 %v1333, 1.0
    %v1348 = vadd.f32 %v1335, 1.0
    %v1349 = vadd.f32 %v1337, 1.0
    %v1350 = vrcp.pop %v1338
    %v1351 = vrcp.pop %v1339
    %v1352 = vrcp.pop %v1340
    %v1353 = vrcp.pop %v1341
    %v1354 = vrcp.pop %v1342
    %v1355 = vrcp.pop %v1343
    %v1356 = vrcp.pop %v1344
    %v1357 = vrcp.pop %v1345
    %v1358 = vrcp.pop %v1346
    %v1359 = vrcp.pop %v1347
    %v1360 = vrcp.pop %v1348
    %v1361 = vrcp.pop %v1349
    %v1362 = vsub.f32 %v182, %v114
    %v1363 = vsub.f32 %v183, %v115
    %v1364 = vsub.f32 %v184, %v116
    %v1365 = vsub.f32 %v185, %v117
    %v1366 = vsub.f32 %v186, %v118
    %v1367 = vsub.f32 %v187, %v119
    %v1368 = vsub.f32 %v188, %v120
    %v1369 = vsub.f32 %v189, %v121
    %v1370 = vsub.f32 %v190, %v122
    %v1371 = vsub.f32 %v191, %v123
    %v1372 = vsub.f32 %v192, %v124
    %v1373 = vsub.f32 %v193, %v125
    %v1374 = vsub.f32 %v194, %v126
    %v1375 = vsub.f32 %v195, %v127
    %v1376 = vsub.f32 %v196, %v128
    %v1377 = vsub.f32 %v197, %v129
    %v1378 = vsub.f32 %v198, %v130
    %v1379 = vsub.f32 %v199, %v131
    %v1380 = vsub.f32 %v200, %v132
    %v1381 = vsub.f32 %v201, %v133
    %v1382 = vsub.f32 %v202, %v134
    %v1383 = vsub.f32 %v203, %v135
    %v1384 = vsub.f32 %v204, %v136
    %v1385 = vsub.f32 %v205, %v137
    %v1386 = vmul.f32 %v1362, %v1244
    %v1387 = vmul.f32 %v1363, %v1246
    %v1388 = vmul.f32 %v1364, %v1248
    %v1389 = vmul.f32 %v1365, %v1250
    %v1390 = vmul.f32 %v1366, %v1254
    %v1391 = vmul.f32 %v1367, %v1256
    %v1392 = vmul.f32 %v1368, %v1258
    %v1393 = vmul.f32 %v1369, %v1260
    %v1394 = vmul.f32 %v1370, %v1264
    %v1395 = vmul.f32 %v1371, %v1266
    %v1396 = vmul.f32 %v1372, %v1268
    %v1397 = vmul.f32 %v1373, %v1270
    %v1398 = vmul.f32 %v1374, %v1274
    %v1399 = vmul.f32 %v1375, %v1276
    %v1400 = vmul.f32 %v1376, %v1278
    %v1401 = vmul.f32 %v1377, %v1280
    %v1402 = vmul.f32 %v1378, %v1284
    %v1403 = vmul.f32 %v1379, %v1286
    %v1404 = vmul.f32 %v1380, %v1288
    %v1405 = vmul.f32 %v1381, %v1290
    %v1406 = vmul.f32 %v1382, %v1294
    %v1407 = vmul.f32 %v1383, %v1296
    %v1408 = vmul.f32 %v1384, %v1298
    %v1409 = vmul.f32 %v1385, %v1300
    %vm1410 = vcmp.gt.f32.partialorder %v1386, 0.0
    %vm1411 = vcmp.gt.f32.partialorder %v1387, 0.0
    %vm1412 = vcmp.gt.f32.partialorder %v1388, 0.0
    %vm1413 = vcmp.gt.f32.partialorder %v1389, 0.0
    %vm1414 = vcmp.gt.f32.partialorder %v1390, 0.0
    %vm1415 = vcmp.gt.f32.partialorder %v1391, 0.0
    %vm1416 = vcmp.gt.f32.partialorder %v1392, 0.0
    %vm1417 = vcmp.gt.f32.partialorder %v1393, 0.0
    %vm1418 = vcmp.gt.f32.partialorder %v1394, 0.0
    %vm1419 = vcmp.gt.f32.partialorder %v1395, 0.0
    %vm1420 = vcmp.gt.f32.partialorder %v1396, 0.0
    %vm1421 = vcmp.gt.f32.partialorder %v1397, 0.0
    %vm1422 = vcmp.gt.f32.partialorder %v1398, 0.0
    %vm1423 = vcmp.gt.f32.partialorder %v1399, 0.0
    %vm1424 = vcmp.gt.f32.partialorder %v1400, 0.0
    %vm1425 = vcmp.gt.f32.partialorder %v1401, 0.0
    %vm1426 = vcmp.gt.f32.partialorder %v1402, 0.0
    %vm1427 = vcmp.gt.f32.partialorder %v1403, 0.0
    %vm1428 = vcmp.gt.f32.partialorder %v1404, 0.0
    %vm1429 = vcmp.gt.f32.partialorder %v1405, 0.0
    %vm1430 = vcmp.gt.f32.partialorder %v1406, 0.0
    %vm1431 = vcmp.gt.f32.partialorder %v1407, 0.0
    %vm1432 = vcmp.gt.f32.partialorder %v1408, 0.0
    %vm1433 = vcmp.gt.f32.partialorder %v1409, 0.0
    %v1434 = vsel %vm1410, %v1244, 0.0
    %v1435 = vsel %vm1411, %v1246, 0.0
    %v1436 = vsel %vm1412, %v1248, 0.0
    %v1437 = vsel %vm1413, %v1250, 0.0
    %v1438 = vsel %vm1414, %v1254, 0.0
    %v1439 = vsel %vm1415, %v1256, 0.0
    %v1440 = vsel %vm1416, %v1258, 0.0
    %v1441 = vsel %vm1417, %v1260, 0.0
    %v1442 = vsel %vm1418, %v1264, 0.0
    %v1443 = vsel %vm1419, %v1266, 0.0
    %v1444 = vsel %vm1420, %v1268, 0.0
    %v1445 = vsel %vm1421, %v1270, 0.0
    %v1446 = vsel %vm1422, %v1274, 0.0
    %v1447 = vsel %vm1423, %v1276, 0.0
    %v1448 = vsel %vm1424, %v1278, 0.0
    %v1449 = vsel %vm1425, %v1280, 0.0
    %v1450 = vsel %vm1426, %v1284, 0.0
    %v1451 = vsel %vm1427, %v1286, 0.0
    %v1452 = vsel %vm1428, %v1288, 0.0
    %v1453 = vsel %vm1429, %v1290, 0.0
    %v1454 = vsel %vm1430, %v1294, 0.0
    %v1455 = vsel %vm1431, %v1296, 0.0
    %v1456 = vsel %vm1432, %v1298, 0.0
    %v1457 = vsel %vm1433, %v1300, 0.0
    %1459 = vset.pattern.permute.xlu0 0
    %1460 = vperm.xlu0 %1459, %v1350
    %v1461 = vpop.permute.xlu0 %1460
    %1464 = vset.pattern.permute.xlu0 0
    %1465 = vperm.xlu0 %1464, %v1351
    %v1466 = vpop.permute.xlu0 %1465
    %1469 = vset.pattern.permute.xlu0 0
    %1470 = vperm.xlu0 %1469, %v1352
    %v1471 = vpop.permute.xlu0 %1470
    %1474 = vset.pattern.permute.xlu0 0
    %1475 = vperm.xlu0 %1474, %v1353
    %v1476 = vpop.permute.xlu0 %1475
    %1479 = vset.pattern.permute.xlu0 0
    %1480 = vperm.xlu0 %1479, %v1354
    %v1481 = vpop.permute.xlu0 %1480
    %1484 = vset.pattern.permute.xlu0 0
    %1485 = vperm.xlu0 %1484, %v1355
    %v1486 = vpop.permute.xlu0 %1485
    %1489 = vset.pattern.permute.xlu0 0
    %1490 = vperm.xlu0 %1489, %v1356
    %v1491 = vpop.permute.xlu0 %1490
    %1494 = vset.pattern.permute.xlu0 0
    %1495 = vperm.xlu0 %1494, %v1357
    %v1496 = vpop.permute.xlu0 %1495
    %1499 = vset.pattern.permute.xlu0 0
    %1500 = vperm.xlu0 %1499, %v1358
    %v1501 = vpop.permute.xlu0 %1500
    %1504 = vset.pattern.permute.xlu0 0
    %1505 = vperm.xlu0 %1504, %v1359
    %v1506 = vpop.permute.xlu0 %1505
    %1509 = vset.pattern.permute.xlu0 0
    %1510 = vperm.xlu0 %1509, %v1360
    %v1511 = vpop.permute.xlu0 %1510
    %1514 = vset.pattern.permute.xlu0 0
    %1515 = vperm.xlu0 %1514, %v1361
    %v1516 = vpop.permute.xlu0 %1515
    %v1518 = vmul.f32 %v1461, %v1434
    %v1519 = vmul.f32 %v1461, %v1435
    %v1520 = vmul.f32 %v1466, %v1436
    %v1521 = vmul.f32 %v1466, %v1437
    %v1522 = vmul.f32 %v1471, %v1438
    %v1523 = vmul.f32 %v1471, %v1439
    %v1524 = vmul.f32 %v1476, %v1440
    %v1525 = vmul.f32 %v1476, %v1441
    %v1526 = vmul.f32 %v1481, %v1442
    %v1527 = vmul.f32 %v1481, %v1443
    %v1528 = vmul.f32 %v1486, %v1444
    %v1529 = vmul.f32 %v1486, %v1445
    %v1530 = vmul.f32 %v1491, %v1446
    %v1531 = vmul.f32 %v1491, %v1447
    %v1532 = vmul.f32 %v1496, %v1448
    %v1533 = vmul.f32 %v1496, %v1449
    %v1534 = vmul.f32 %v1501, %v1450
    %v1535 = vmul.f32 %v1501, %v1451
    %v1536 = vmul.f32 %v1506, %v1452
    %v1537 = vmul.f32 %v1506, %v1453
    %v1538 = vmul.f32 %v1511, %v1454
    %v1539 = vmul.f32 %v1511, %v1455
    %v1540 = vmul.f32 %v1516, %v1456
    %v1541 = vmul.f32 %v1516, %v1457
    %v1542 = vadd.f32 %v114, %v1518
    %v1543 = vadd.f32 %v115, %v1519
    %v1544 = vadd.f32 %v116, %v1520
    %v1545 = vadd.f32 %v117, %v1521
    %v1546 = vadd.f32 %v118, %v1522
    %v1547 = vadd.f32 %v119, %v1523
    %v1548 = vadd.f32 %v120, %v1524
    %v1549 = vadd.f32 %v121, %v1525
    %v1550 = vadd.f32 %v122, %v1526
    %v1551 = vadd.f32 %v123, %v1527
    %v1552 = vadd.f32 %v124, %v1528
    %v1553 = vadd.f32 %v125, %v1529
    %v1554 = vadd.f32 %v126, %v1530
    %v1555 = vadd.f32 %v127, %v1531
    %v1556 = vadd.f32 %v128, %v1532
    %v1557 = vadd.f32 %v129, %v1533
    %v1558 = vadd.f32 %v130, %v1534
    %v1559 = vadd.f32 %v131, %v1535
    %v1560 = vadd.f32 %v132, %v1536
    %v1561 = vadd.f32 %v133, %v1537
    %v1562 = vadd.f32 %v134, %v1538
    %v1563 = vadd.f32 %v135, %v1539
    %v1564 = vadd.f32 %v136, %v1540
    %v1565 = vadd.f32 %v137, %v1541
    %1566 = vst [vmem:[#allocation11] sm:$0xff] %v1542
    %1567 = vst [vmem:[#allocation11 + $0x8] sm:$0xff] %v1543
    %1568 = vst [vmem:[#allocation11 + $0x10] sm:$0xff] %v1544
    %1569 = vst [vmem:[#allocation11 + $0x18] sm:$0xff] %v1545
    %1570 = vst [vmem:[#allocation11 + $0x20] sm:$0xff] %v1546
    %1571 = vst [vmem:[#allocation11 + $0x28] sm:$0xff] %v1547
    %1572 = vst [vmem:[#allocation11 + $0x30] sm:$0xff] %v1548
    %1573 = vst [vmem:[#allocation11 + $0x38] sm:$0xff] %v1549
    %1574 = vst [vmem:[#allocation11 + $0x40] sm:$0xff] %v1550
    %1575 = vst [vmem:[#allocation11 + $0x48] sm:$0xff] %v1551
    %1576 = vst [vmem:[#allocation11 + $0x50] sm:$0xff] %v1552
    %1577 = vst [vmem:[#allocation11 + $0x58] sm:$0xff] %v1553
    %1578 = vst [vmem:[#allocation11 + $0x60] sm:$0xff] %v1554
    %1579 = vst [vmem:[#allocation11 + $0x68] sm:$0xff] %v1555
    %1580 = vst [vmem:[#allocation11 + $0x70] sm:$0xff] %v1556
    %1581 = vst [vmem:[#allocation11 + $0x78] sm:$0xff] %v1557
    %1582 = vst [vmem:[#allocation11 + $0x80] sm:$0xff] %v1558
    %1583 = vst [vmem:[#allocation11 + $0x88] sm:$0xff] %v1559
    %1584 = vst [vmem:[#allocation11 + $0x90] sm:$0xff] %v1560
    %1585 = vst [vmem:[#allocation11 + $0x98] sm:$0xff] %v1561
    %1586 = vst [vmem:[#allocation11 + $0xa0] sm:$0xff] %v1562
    %1587 = vst [vmem:[#allocation11 + $0xa8] sm:$0xff] %v1563
    %1588 = vst [vmem:[#allocation11 + $0xb0] sm:$0xff] %v1564
    %1589 = vst [vmem:[#allocation11 + $0xb8] sm:$0xff] %v1565
    // Predicated region
    $region58: #{closer_embedding_updater.1} parent=1 // pred_check
      _
    $region59: #{closer_embedding_updater.1} parent=1 // pred_check_branch
      %1591 = sbr.rel (0) target = $region61
    $region60: #{closer_embedding_updater.1} parent=1 // pred_region
      %s1593 = ssub.s32 3072, 3072
      %1594 = vsyncadd [#allocation4], %s1593
      %s1595 = sshll.u32 [#allocation11], 4
      %s1596 = int_to_ptr.vmem [resolvable:$true] %s1595
      %1601 = dma.vmem_to_hbm [thread:$0]  %s1596, 3072, %s9, [#allocation4], 256, 256, 16
    $region61: #{closer_embedding_updater.1} parent=1 // pred_fallthru
      _
    // Predicated region
    $region62: #{closer_embedding_updater.1} parent=1 // pred_check
      _
    $region63: #{closer_embedding_updater.1} parent=1 // pred_check_branch
      %1603 = sbr.rel (0) target = $region65
    $region64: #{closer_embedding_updater.1} parent=1 // pred_region
      %1604 = dma.done [#allocation4], 3072
    $region65: #{closer_embedding_updater.1} parent=1 // pred_fallthru
      _
    %1605 = vsyncpa [#allocation3], 1
    %1606 = vsyncpa [#allocation6], 1
    %1607 = vsyncpa [#allocation9], 1
    %1608 = vsyncpa [#allocation4], 1

</llo_original>
